<compile_context>
chip_gen: v7x
topology: tpu7x:2x2x1
jax: 0.10.0
libtpu: 0.0.40
codegen_flags: <defaults>
</compile_context>

<pallas_src>
import math
import jax
import jax.numpy as jnp
from jax.experimental import pallas as pl
from jax.experimental.pallas import tpu as pltpu

# ---- "config" (small, consistent with a BERT-style encoder layer) ----
HIDDEN = 32
NUM_HEADS = 4
HEAD_DIM = HIDDEN // NUM_HEADS
LN_EPS = 1e-12
BATCH = 2
SEQ = 16


def attention_kernel(x_ref, wqkv_ref, bqkv_ref, wo_ref, obg_ref, out_ref, ctx_ref):
    H, S, NH, HD = HIDDEN, SEQ, NUM_HEADS, HEAD_DIM
    x = x_ref[...]                                   # (B*S, H)

    # --- fused Q/K/V projection: one MXU matmul over all tokens ---
    # (1/sqrt(HD) is already folded into the Q columns of wqkv/bqkv.)
    qkv = jnp.dot(x, wqkv_ref[...], preferred_element_type=jnp.float32) + bqkv_ref[...]

    # --- per-(batch, head) attention; static loops (B*NH = 8 tiny tiles) ---
    # Context is stored straight into the packed (B*S, H) scratch (no concat).
    for b in range(BATCH):
        r0 = b * S
        for h in range(NH):
            c0 = h * HD
            qh = qkv[r0:r0 + S, c0:c0 + HD]                     # (S, HD)
            kh = qkv[r0:r0 + S, H + c0:H + c0 + HD]             # (S, HD)
            vh = qkv[r0:r0 + S, 2 * H + c0:2 * H + c0 + HD]     # (S, HD)
            s = jnp.dot(qh, kh.T, preferred_element_type=jnp.float32)   # (S, S)
            s = s - jnp.max(s, axis=-1, keepdims=True)
            e = jnp.exp(s)
            p = e * pl.reciprocal(jnp.sum(e, axis=-1, keepdims=True), approx=True)
            ctx_ref[r0:r0 + S, c0:c0 + HD] = jnp.dot(
                p, vh, preferred_element_type=jnp.float32)

    # --- SelfOutput: dense -> residual add -> LayerNorm (all tokens at once) ---
    bo = obg_ref[0:1, :]
    gamma = obg_ref[1:2, :]
    beta = obg_ref[2:3, :]
    proj = jnp.dot(ctx_ref[...], wo_ref[...], preferred_element_type=jnp.float32) + bo
    y = proj + x
    mean = jnp.mean(y, axis=-1, keepdims=True)
    var = jnp.mean((y - mean) * (y - mean), axis=-1, keepdims=True)
    norm = (y - mean) * jax.lax.rsqrt(var + LN_EPS)
    out_ref[...] = norm * gamma + beta


def attention_forward(x, params):
    B, S, H = x.shape
    (wq, bq, wk, bk, wv, bv, wo, bo, gamma, beta) = params
    scale = 1.0 / math.sqrt(HEAD_DIM)

    # Trace-time parameter packing (plain XLA, outside the kernel):
    wqkv = jnp.concatenate([wq * scale, wk, wv], axis=1)    # (H, 3H), Q pre-scaled
    bqkv = jnp.concatenate([bq * scale, bk, bv], axis=1)    # (1, 3H)
    obg = jnp.concatenate([bo, gamma, beta], axis=0)        # (3, H)

    T = B * S
    x2d = x.reshape(T, H)

    out2d = pl.pallas_call(
        attention_kernel,
        out_shape=jax.ShapeDtypeStruct((T, H), jnp.float32),
        grid=(1,),
        in_specs=[
            pl.BlockSpec((T, H), lambda i: (0, 0)),          # x (flattened tokens)
            pl.BlockSpec((H, 3 * H), lambda i: (0, 0)),      # fused Wqkv
            pl.BlockSpec((1, 3 * H), lambda i: (0, 0)),      # fused bqkv
            pl.BlockSpec((H, H), lambda i: (0, 0)),          # Wo
            pl.BlockSpec((3, H), lambda i: (0, 0)),          # [bo; gamma; beta]
        ],
        out_specs=pl.BlockSpec((T, H), lambda i: (0, 0)),
        scratch_shapes=[pltpu.VMEM((T, H), jnp.float32)],    # packed per-head context
        compiler_params=pltpu.CompilerParams(dimension_semantics=("arbitrary",)),
    )(x2d, wqkv, bqkv, wo, obg)
    return out2d.reshape(B, S, H)


def reference_forward(x, params):
    (wq, bq, wk, bk, wv, bv, wo, bo, gamma, beta) = params
    B, S, H = x.shape
    q = x @ wq + bq[0]
    k = x @ wk + bk[0]
    v = x @ wv + bv[0]

    def split(t):  # (B,S,H) -> (B,nh,S,hd)
        return t.reshape(B, S, NUM_HEADS, HEAD_DIM).transpose(0, 2, 1, 3)

    qh, kh, vh = split(q), split(k), split(v)
    s = jnp.einsum('bhqd,bhkd->bhqk', qh, kh) / math.sqrt(HEAD_DIM)
    p = jax.nn.softmax(s, axis=-1)
    ctx = jnp.einsum('bhqk,bhkd->bhqd', p, vh)
    ctx = ctx.transpose(0, 2, 1, 3).reshape(B, S, H)
    proj = ctx @ wo + bo[0]
    y = proj + x
    mean = jnp.mean(y, axis=-1, keepdims=True)
    var = jnp.mean((y - mean) ** 2, axis=-1, keepdims=True)
    return (y - mean) * jax.lax.rsqrt(var + LN_EPS) * gamma[0] + beta[0]


def make_params(key):
    ks = jax.random.split(key, 10)
    scale = 0.05
    wq = scale * jax.random.normal(ks[0], (HIDDEN, HIDDEN), jnp.float32)
    wk = scale * jax.random.normal(ks[1], (HIDDEN, HIDDEN), jnp.float32)
    wv = scale * jax.random.normal(ks[2], (HIDDEN, HIDDEN), jnp.float32)
    wo = scale * jax.random.normal(ks[3], (HIDDEN, HIDDEN), jnp.float32)
    bq = scale * jax.random.normal(ks[4], (1, HIDDEN), jnp.float32)
    bk = scale * jax.random.normal(ks[5], (1, HIDDEN), jnp.float32)
    bv = scale * jax.random.normal(ks[6], (1, HIDDEN), jnp.float32)
    bo = scale * jax.random.normal(ks[7], (1, HIDDEN), jnp.float32)
    gamma = 1.0 + 0.1 * jax.random.normal(ks[8], (1, HIDDEN), jnp.float32)
    beta = 0.1 * jax.random.normal(ks[9], (1, HIDDEN), jnp.float32)
    return (wq, bq, wk, bk, wv, bv, wo, bo, gamma, beta)


if __name__ == "__main__":
    key = jax.random.PRNGKey(0)
    kx, kp = jax.random.split(key)
    x = jax.random.normal(kx, (BATCH, SEQ, HIDDEN), jnp.float32)
    params = make_params(kp)

    out = attention_forward(x, params)
    out = jax.block_until_ready(out)

    ref = reference_forward(x, params)
    assert out.shape == (BATCH, SEQ, HIDDEN)
    # tolerance loosened slightly to admit the approx-reciprocal softmax denom
    assert jnp.allclose(out, ref, atol=5e-4, rtol=5e-4), "mismatch vs JAX reference"
    print("KERNEL_OK")
</pallas_src>

<mosaic_0001>
module attributes {stable_mosaic.version = 11 : i64} {
  func.func @attention_kernel(%arg0: i32, %arg1: memref<32x32xf32, #tpu.memory_space<vmem>>, %arg2: memref<32x96xf32, #tpu.memory_space<vmem>>, %arg3: memref<1x96xf32, #tpu.memory_space<vmem>>, %arg4: memref<32x32xf32, #tpu.memory_space<vmem>>, %arg5: memref<3x32xf32, #tpu.memory_space<vmem>>, %arg6: memref<32x32xf32, #tpu.memory_space<vmem>>, %arg7: memref<32x32xf32, #tpu.memory_space<vmem>>) attributes {dimension_semantics = [#tpu.dimension_semantics<arbitrary>], iteration_bounds = array<i64: 1>, scalar_prefetch = 0 : i64, scratch_operands = 1 : i64, tpu.core_type = #tpu.core_type<tc>, window_params = [{pipeline_mode = #tpu.pipeline_mode<synchronous>, transform_indices = @transform_0, window_bounds = array<i64: 32, 32>}, {pipeline_mode = #tpu.pipeline_mode<synchronous>, transform_indices = @transform_1, window_bounds = array<i64: 32, 96>}, {pipeline_mode = #tpu.pipeline_mode<synchronous>, transform_indices = @transform_2, window_bounds = array<i64: 1, 96>}, {pipeline_mode = #tpu.pipeline_mode<synchronous>, transform_indices = @transform_3, window_bounds = array<i64: 32, 32>}, {pipeline_mode = #tpu.pipeline_mode<synchronous>, transform_indices = @transform_4, window_bounds = array<i64: 3, 32>}, {pipeline_mode = #tpu.pipeline_mode<synchronous>, transform_indices = @transform_5, window_bounds = array<i64: 32, 32>}]} {
    %c0 = arith.constant 0 : index
    %c0_0 = arith.constant 0 : index
    %0 = vector.load %arg1[%c0, %c0_0] : memref<32x32xf32, #tpu.memory_space<vmem>>, vector<32x32xf32>
    %c0_1 = arith.constant 0 : index
    %c0_2 = arith.constant 0 : index
    %1 = vector.load %arg2[%c0_1, %c0_2] : memref<32x96xf32, #tpu.memory_space<vmem>>, vector<32x96xf32>
    %cst = arith.constant dense<0.000000e+00> : vector<32x96xf32>
    %2 = tpu.matmul %0, %1, %cst {dimension_numbers = #tpu.dot_dimension_numbers<[1], [0], [0], [1], [0, 0, 1, 1], [], []>} : vector<32x32xf32>, vector<32x96xf32>, vector<32x96xf32> -> vector<32x96xf32>
    %c0_3 = arith.constant 0 : index
    %c0_4 = arith.constant 0 : index
    %3 = vector.load %arg3[%c0_3, %c0_4] : memref<1x96xf32, #tpu.memory_space<vmem>>, vector<1x96xf32>
    %4 = vector.broadcast %3 : vector<1x96xf32> to vector<32x96xf32>
    %5 = arith.addf %2, %4 : vector<32x96xf32>
    %6 = vector.extract_strided_slice %5 {offsets = [0, 0], sizes = [16, 8], strides = [1, 1]} : vector<32x96xf32> to vector<16x8xf32>
    %7 = vector.extract_strided_slice %5 {offsets = [0, 32], sizes = [16, 8], strides = [1, 1]} : vector<32x96xf32> to vector<16x8xf32>
    %8 = vector.extract_strided_slice %5 {offsets = [0, 64], sizes = [16, 8], strides = [1, 1]} : vector<32x96xf32> to vector<16x8xf32>
    %9 = tpu.transpose %7, [1, 0] : vector<16x8xf32> -> vector<8x16xf32>
    %cst_5 = arith.constant dense<0.000000e+00> : vector<16x16xf32>
    %10 = tpu.matmul %6, %9, %cst_5 {dimension_numbers = #tpu.dot_dimension_numbers<[1], [0], [0], [1], [0, 0, 1, 1], [], []>} : vector<16x8xf32>, vector<8x16xf32>, vector<16x16xf32> -> vector<16x16xf32>
    %cst_6 = arith.constant dense<0xFF800000> : vector<16xf32>
    %11 = vector.multi_reduction <maximumf>, %10, %cst_6 [1] : vector<16x16xf32> to vector<16xf32>
    %12 = vector.shape_cast %11 : vector<16xf32> to vector<16x1xf32>
    %13 = vector.broadcast %12 : vector<16x1xf32> to vector<16x16xf32>
    %14 = arith.subf %10, %13 : vector<16x16xf32>
    %15 = math.exp %14 : vector<16x16xf32>
    %cst_7 = arith.constant dense<0.000000e+00> : vector<16xf32>
    %16 = vector.multi_reduction <add>, %15, %cst_7 [1] : vector<16x16xf32> to vector<16xf32>
    %17 = vector.shape_cast %16 : vector<16xf32> to vector<16x1xf32>
    %18 = tpu.reciprocal %17 {approx = true} : vector<16x1xf32> -> vector<16x1xf32>
    %19 = vector.broadcast %18 : vector<16x1xf32> to vector<16x16xf32>
    %20 = arith.mulf %15, %19 : vector<16x16xf32>
    %cst_8 = arith.constant dense<0.000000e+00> : vector<16x8xf32>
    %21 = tpu.matmul %20, %8, %cst_8 {dimension_numbers = #tpu.dot_dimension_numbers<[1], [0], [0], [1], [0, 0, 1, 1], [], []>} : vector<16x16xf32>, vector<16x8xf32>, vector<16x8xf32> -> vector<16x8xf32>
    %c0_9 = arith.constant 0 : index
    %c0_10 = arith.constant 0 : index
    %22 = vector.load %arg7[%c0_9, %c0_10] : memref<32x32xf32, #tpu.memory_space<vmem>>, vector<16x8xf32>
    tpu.vector_store %arg7[%c0_9, %c0_10], %21 {strides = array<i32>} : memref<32x32xf32, #tpu.memory_space<vmem>>, vector<16x8xf32>,
    %23 = vector.extract_strided_slice %5 {offsets = [0, 8], sizes = [16, 8], strides = [1, 1]} : vector<32x96xf32> to vector<16x8xf32>
    %24 = vector.extract_strided_slice %5 {offsets = [0, 40], sizes = [16, 8], strides = [1, 1]} : vector<32x96xf32> to vector<16x8xf32>
    %25 = vector.extract_strided_slice %5 {offsets = [0, 72], sizes = [16, 8], strides = [1, 1]} : vector<32x96xf32> to vector<16x8xf32>
    %26 = tpu.transpose %24, [1, 0] : vector<16x8xf32> -> vector<8x16xf32>
    %cst_11 = arith.constant dense<0.000000e+00> : vector<16x16xf32>
    %27 = tpu.matmul %23, %26, %cst_11 {dimension_numbers = #tpu.dot_dimension_numbers<[1], [0], [0], [1], [0, 0, 1, 1], [], []>} : vector<16x8xf32>, vector<8x16xf32>, vector<16x16xf32> -> vector<16x16xf32>
    %cst_12 = arith.constant dense<0xFF800000> : vector<16xf32>
    %28 = vector.multi_reduction <maximumf>, %27, %cst_12 [1] : vector<16x16xf32> to vector<16xf32>
    %29 = vector.shape_cast %28 : vector<16xf32> to vector<16x1xf32>
    %30 = vector.broadcast %29 : vector<16x1xf32> to vector<16x16xf32>
    %31 = arith.subf %27, %30 : vector<16x16xf32>
    %32 = math.exp %31 : vector<16x16xf32>
    %cst_13 = arith.constant dense<0.000000e+00> : vector<16xf32>
    %33 = vector.multi_reduction <add>, %32, %cst_13 [1] : vector<16x16xf32> to vector<16xf32>
    %34 = vector.shape_cast %33 : vector<16xf32> to vector<16x1xf32>
    %35 = tpu.reciprocal %34 {approx = true} : vector<16x1xf32> -> vector<16x1xf32>
    %36 = vector.broadcast %35 : vector<16x1xf32> to vector<16x16xf32>
    %37 = arith.mulf %32, %36 : vector<16x16xf32>
    %cst_14 = arith.constant dense<0.000000e+00> : vector<16x8xf32>
    %38 = tpu.matmul %37, %25, %cst_14 {dimension_numbers = #tpu.dot_dimension_numbers<[1], [0], [0], [1], [0, 0, 1, 1], [], []>} : vector<16x16xf32>, vector<16x8xf32>, vector<16x8xf32> -> vector<16x8xf32>
    %c0_15 = arith.constant 0 : index
    %c8 = arith.constant 8 : index
    %39 = vector.load %arg7[%c0_15, %c8] : memref<32x32xf32, #tpu.memory_space<vmem>>, vector<16x8xf32>
    tpu.vector_store %arg7[%c0_15, %c8], %38 {strides = array<i32>} : memref<32x32xf32, #tpu.memory_space<vmem>>, vector<16x8xf32>,
    %40 = vector.extract_strided_slice %5 {offsets = [0, 16], sizes = [16, 8], strides = [1, 1]} : vector<32x96xf32> to vector<16x8xf32>
    %41 = vector.extract_strided_slice %5 {offsets = [0, 48], sizes = [16, 8], strides = [1, 1]} : vector<32x96xf32> to vector<16x8xf32>
    %42 = vector.extract_strided_slice %5 {offsets = [0, 80], sizes = [16, 8], strides = [1, 1]} : vector<32x96xf32> to vector<16x8xf32>
    %43 = tpu.transpose %41, [1, 0] : vector<16x8xf32> -> vector<8x16xf32>
    %cst_16 = arith.constant dense<0.000000e+00> : vector<16x16xf32>
    %44 = tpu.matmul %40, %43, %cst_16 {dimension_numbers = #tpu.dot_dimension_numbers<[1], [0], [0], [1], [0, 0, 1, 1], [], []>} : vector<16x8xf32>, vector<8x16xf32>, vector<16x16xf32> -> vector<16x16xf32>
    %cst_17 = arith.constant dense<0xFF800000> : vector<16xf32>
    %45 = vector.multi_reduction <maximumf>, %44, %cst_17 [1] : vector<16x16xf32> to vector<16xf32>
    %46 = vector.shape_cast %45 : vector<16xf32> to vector<16x1xf32>
    %47 = vector.broadcast %46 : vector<16x1xf32> to vector<16x16xf32>
    %48 = arith.subf %44, %47 : vector<16x16xf32>
    %49 = math.exp %48 : vector<16x16xf32>
    %cst_18 = arith.constant dense<0.000000e+00> : vector<16xf32>
    %50 = vector.multi_reduction <add>, %49, %cst_18 [1] : vector<16x16xf32> to vector<16xf32>
    %51 = vector.shape_cast %50 : vector<16xf32> to vector<16x1xf32>
    %52 = tpu.reciprocal %51 {approx = true} : vector<16x1xf32> -> vector<16x1xf32>
    %53 = vector.broadcast %52 : vector<16x1xf32> to vector<16x16xf32>
    %54 = arith.mulf %49, %53 : vector<16x16xf32>
    %cst_19 = arith.constant dense<0.000000e+00> : vector<16x8xf32>
    %55 = tpu.matmul %54, %42, %cst_19 {dimension_numbers = #tpu.dot_dimension_numbers<[1], [0], [0], [1], [0, 0, 1, 1], [], []>} : vector<16x16xf32>, vector<16x8xf32>, vector<16x8xf32> -> vector<16x8xf32>
    %c0_20 = arith.constant 0 : index
    %c16 = arith.constant 16 : index
    %56 = vector.load %arg7[%c0_20, %c16] : memref<32x32xf32, #tpu.memory_space<vmem>>, vector<16x8xf32>
    tpu.vector_store %arg7[%c0_20, %c16], %55 {strides = array<i32>} : memref<32x32xf32, #tpu.memory_space<vmem>>, vector<16x8xf32>,
    %57 = vector.extract_strided_slice %5 {offsets = [0, 24], sizes = [16, 8], strides = [1, 1]} : vector<32x96xf32> to vector<16x8xf32>
    %58 = vector.extract_strided_slice %5 {offsets = [0, 56], sizes = [16, 8], strides = [1, 1]} : vector<32x96xf32> to vector<16x8xf32>
    %59 = vector.extract_strided_slice %5 {offsets = [0, 88], sizes = [16, 8], strides = [1, 1]} : vector<32x96xf32> to vector<16x8xf32>
    %60 = tpu.transpose %58, [1, 0] : vector<16x8xf32> -> vector<8x16xf32>
    %cst_21 = arith.constant dense<0.000000e+00> : vector<16x16xf32>
    %61 = tpu.matmul %57, %60, %cst_21 {dimension_numbers = #tpu.dot_dimension_numbers<[1], [0], [0], [1], [0, 0, 1, 1], [], []>} : vector<16x8xf32>, vector<8x16xf32>, vector<16x16xf32> -> vector<16x16xf32>
    %cst_22 = arith.constant dense<0xFF800000> : vector<16xf32>
    %62 = vector.multi_reduction <maximumf>, %61, %cst_22 [1] : vector<16x16xf32> to vector<16xf32>
    %63 = vector.shape_cast %62 : vector<16xf32> to vector<16x1xf32>
    %64 = vector.broadcast %63 : vector<16x1xf32> to vector<16x16xf32>
    %65 = arith.subf %61, %64 : vector<16x16xf32>
    %66 = math.exp %65 : vector<16x16xf32>
    %cst_23 = arith.constant dense<0.000000e+00> : vector<16xf32>
    %67 = vector.multi_reduction <add>, %66, %cst_23 [1] : vector<16x16xf32> to vector<16xf32>
    %68 = vector.shape_cast %67 : vector<16xf32> to vector<16x1xf32>
    %69 = tpu.reciprocal %68 {approx = true} : vector<16x1xf32> -> vector<16x1xf32>
    %70 = vector.broadcast %69 : vector<16x1xf32> to vector<16x16xf32>
    %71 = arith.mulf %66, %70 : vector<16x16xf32>
    %cst_24 = arith.constant dense<0.000000e+00> : vector<16x8xf32>
    %72 = tpu.matmul %71, %59, %cst_24 {dimension_numbers = #tpu.dot_dimension_numbers<[1], [0], [0], [1], [0, 0, 1, 1], [], []>} : vector<16x16xf32>, vector<16x8xf32>, vector<16x8xf32> -> vector<16x8xf32>
    %c0_25 = arith.constant 0 : index
    %c24 = arith.constant 24 : index
    %73 = vector.load %arg7[%c0_25, %c24] : memref<32x32xf32, #tpu.memory_space<vmem>>, vector<16x8xf32>
    tpu.vector_store %arg7[%c0_25, %c24], %72 {strides = array<i32>} : memref<32x32xf32, #tpu.memory_space<vmem>>, vector<16x8xf32>,
    %74 = vector.extract_strided_slice %5 {offsets = [16, 0], sizes = [16, 8], strides = [1, 1]} : vector<32x96xf32> to vector<16x8xf32>
    %75 = vector.extract_strided_slice %5 {offsets = [16, 32], sizes = [16, 8], strides = [1, 1]} : vector<32x96xf32> to vector<16x8xf32>
    %76 = vector.extract_strided_slice %5 {offsets = [16, 64], sizes = [16, 8], strides = [1, 1]} : vector<32x96xf32> to vector<16x8xf32>
    %77 = tpu.transpose %75, [1, 0] : vector<16x8xf32> -> vector<8x16xf32>
    %cst_26 = arith.constant dense<0.000000e+00> : vector<16x16xf32>
    %78 = tpu.matmul %74, %77, %cst_26 {dimension_numbers = #tpu.dot_dimension_numbers<[1], [0], [0], [1], [0, 0, 1, 1], [], []>} : vector<16x8xf32>, vector<8x16xf32>, vector<16x16xf32> -> vector<16x16xf32>
    %cst_27 = arith.constant dense<0xFF800000> : vector<16xf32>
    %79 = vector.multi_reduction <maximumf>, %78, %cst_27 [1] : vector<16x16xf32> to vector<16xf32>
    %80 = vector.shape_cast %79 : vector<16xf32> to vector<16x1xf32>
    %81 = vector.broadcast %80 : vector<16x1xf32> to vector<16x16xf32>
    %82 = arith.subf %78, %81 : vector<16x16xf32>
    %83 = math.exp %82 : vector<16x16xf32>
    %cst_28 = arith.constant dense<0.000000e+00> : vector<16xf32>
    %84 = vector.multi_reduction <add>, %83, %cst_28 [1] : vector<16x16xf32> to vector<16xf32>
    %85 = vector.shape_cast %84 : vector<16xf32> to vector<16x1xf32>
    %86 = tpu.reciprocal %85 {approx = true} : vector<16x1xf32> -> vector<16x1xf32>
    %87 = vector.broadcast %86 : vector<16x1xf32> to vector<16x16xf32>
    %88 = arith.mulf %83, %87 : vector<16x16xf32>
    %cst_29 = arith.constant dense<0.000000e+00> : vector<16x8xf32>
    %89 = tpu.matmul %88, %76, %cst_29 {dimension_numbers = #tpu.dot_dimension_numbers<[1], [0], [0], [1], [0, 0, 1, 1], [], []>} : vector<16x16xf32>, vector<16x8xf32>, vector<16x8xf32> -> vector<16x8xf32>
    %c16_30 = arith.constant 16 : index
    %c0_31 = arith.constant 0 : index
    %90 = vector.load %arg7[%c16_30, %c0_31] : memref<32x32xf32, #tpu.memory_space<vmem>>, vector<16x8xf32>
    tpu.vector_store %arg7[%c16_30, %c0_31], %89 {strides = array<i32>} : memref<32x32xf32, #tpu.memory_space<vmem>>, vector<16x8xf32>,
    %91 = vector.extract_strided_slice %5 {offsets = [16, 8], sizes = [16, 8], strides = [1, 1]} : vector<32x96xf32> to vector<16x8xf32>
    %92 = vector.extract_strided_slice %5 {offsets = [16, 40], sizes = [16, 8], strides = [1, 1]} : vector<32x96xf32> to vector<16x8xf32>
    %93 = vector.extract_strided_slice %5 {offsets = [16, 72], sizes = [16, 8], strides = [1, 1]} : vector<32x96xf32> to vector<16x8xf32>
    %94 = tpu.transpose %92, [1, 0] : vector<16x8xf32> -> vector<8x16xf32>
    %cst_32 = arith.constant dense<0.000000e+00> : vector<16x16xf32>
    %95 = tpu.matmul %91, %94, %cst_32 {dimension_numbers = #tpu.dot_dimension_numbers<[1], [0], [0], [1], [0, 0, 1, 1], [], []>} : vector<16x8xf32>, vector<8x16xf32>, vector<16x16xf32> -> vector<16x16xf32>
    %cst_33 = arith.constant dense<0xFF800000> : vector<16xf32>
    %96 = vector.multi_reduction <maximumf>, %95, %cst_33 [1] : vector<16x16xf32> to vector<16xf32>
    %97 = vector.shape_cast %96 : vector<16xf32> to vector<16x1xf32>
    %98 = vector.broadcast %97 : vector<16x1xf32> to vector<16x16xf32>
    %99 = arith.subf %95, %98 : vector<16x16xf32>
    %100 = math.exp %99 : vector<16x16xf32>
    %cst_34 = arith.constant dense<0.000000e+00> : vector<16xf32>
    %101 = vector.multi_reduction <add>, %100, %cst_34 [1] : vector<16x16xf32> to vector<16xf32>
    %102 = vector.shape_cast %101 : vector<16xf32> to vector<16x1xf32>
    %103 = tpu.reciprocal %102 {approx = true} : vector<16x1xf32> -> vector<16x1xf32>
    %104 = vector.broadcast %103 : vector<16x1xf32> to vector<16x16xf32>
    %105 = arith.mulf %100, %104 : vector<16x16xf32>
    %cst_35 = arith.constant dense<0.000000e+00> : vector<16x8xf32>
    %106 = tpu.matmul %105, %93, %cst_35 {dimension_numbers = #tpu.dot_dimension_numbers<[1], [0], [0], [1], [0, 0, 1, 1], [], []>} : vector<16x16xf32>, vector<16x8xf32>, vector<16x8xf32> -> vector<16x8xf32>
    %c16_36 = arith.constant 16 : index
    %c8_37 = arith.constant 8 : index
    %107 = vector.load %arg7[%c16_36, %c8_37] : memref<32x32xf32, #tpu.memory_space<vmem>>, vector<16x8xf32>
    tpu.vector_store %arg7[%c16_36, %c8_37], %106 {strides = array<i32>} : memref<32x32xf32, #tpu.memory_space<vmem>>, vector<16x8xf32>,
    %108 = vector.extract_strided_slice %5 {offsets = [16, 16], sizes = [16, 8], strides = [1, 1]} : vector<32x96xf32> to vector<16x8xf32>
    %109 = vector.extract_strided_slice %5 {offsets = [16, 48], sizes = [16, 8], strides = [1, 1]} : vector<32x96xf32> to vector<16x8xf32>
    %110 = vector.extract_strided_slice %5 {offsets = [16, 80], sizes = [16, 8], strides = [1, 1]} : vector<32x96xf32> to vector<16x8xf32>
    %111 = tpu.transpose %109, [1, 0] : vector<16x8xf32> -> vector<8x16xf32>
    %cst_38 = arith.constant dense<0.000000e+00> : vector<16x16xf32>
    %112 = tpu.matmul %108, %111, %cst_38 {dimension_numbers = #tpu.dot_dimension_numbers<[1], [0], [0], [1], [0, 0, 1, 1], [], []>} : vector<16x8xf32>, vector<8x16xf32>, vector<16x16xf32> -> vector<16x16xf32>
    %cst_39 = arith.constant dense<0xFF800000> : vector<16xf32>
    %113 = vector.multi_reduction <maximumf>, %112, %cst_39 [1] : vector<16x16xf32> to vector<16xf32>
    %114 = vector.shape_cast %113 : vector<16xf32> to vector<16x1xf32>
    %115 = vector.broadcast %114 : vector<16x1xf32> to vector<16x16xf32>
    %116 = arith.subf %112, %115 : vector<16x16xf32>
    %117 = math.exp %116 : vector<16x16xf32>
    %cst_40 = arith.constant dense<0.000000e+00> : vector<16xf32>
    %118 = vector.multi_reduction <add>, %117, %cst_40 [1] : vector<16x16xf32> to vector<16xf32>
    %119 = vector.shape_cast %118 : vector<16xf32> to vector<16x1xf32>
    %120 = tpu.reciprocal %119 {approx = true} : vector<16x1xf32> -> vector<16x1xf32>
    %121 = vector.broadcast %120 : vector<16x1xf32> to vector<16x16xf32>
    %122 = arith.mulf %117, %121 : vector<16x16xf32>
    %cst_41 = arith.constant dense<0.000000e+00> : vector<16x8xf32>
    %123 = tpu.matmul %122, %110, %cst_41 {dimension_numbers = #tpu.dot_dimension_numbers<[1], [0], [0], [1], [0, 0, 1, 1], [], []>} : vector<16x16xf32>, vector<16x8xf32>, vector<16x8xf32> -> vector<16x8xf32>
    %c16_42 = arith.constant 16 : index
    %c16_43 = arith.constant 16 : index
    %124 = vector.load %arg7[%c16_42, %c16_43] : memref<32x32xf32, #tpu.memory_space<vmem>>, vector<16x8xf32>
    tpu.vector_store %arg7[%c16_42, %c16_43], %123 {strides = array<i32>} : memref<32x32xf32, #tpu.memory_space<vmem>>, vector<16x8xf32>,
    %125 = vector.extract_strided_slice %5 {offsets = [16, 24], sizes = [16, 8], strides = [1, 1]} : vector<32x96xf32> to vector<16x8xf32>
    %126 = vector.extract_strided_slice %5 {offsets = [16, 56], sizes = [16, 8], strides = [1, 1]} : vector<32x96xf32> to vector<16x8xf32>
    %127 = vector.extract_strided_slice %5 {offsets = [16, 88], sizes = [16, 8], strides = [1, 1]} : vector<32x96xf32> to vector<16x8xf32>
    %128 = tpu.transpose %126, [1, 0] : vector<16x8xf32> -> vector<8x16xf32>
    %cst_44 = arith.constant dense<0.000000e+00> : vector<16x16xf32>
    %129 = tpu.matmul %125, %128, %cst_44 {dimension_numbers = #tpu.dot_dimension_numbers<[1], [0], [0], [1], [0, 0, 1, 1], [], []>} : vector<16x8xf32>, vector<8x16xf32>, vector<16x16xf32> -> vector<16x16xf32>
    %cst_45 = arith.constant dense<0xFF800000> : vector<16xf32>
    %130 = vector.multi_reduction <maximumf>, %129, %cst_45 [1] : vector<16x16xf32> to vector<16xf32>
    %131 = vector.shape_cast %130 : vector<16xf32> to vector<16x1xf32>
    %132 = vector.broadcast %131 : vector<16x1xf32> to vector<16x16xf32>
    %133 = arith.subf %129, %132 : vector<16x16xf32>
    %134 = math.exp %133 : vector<16x16xf32>
    %cst_46 = arith.constant dense<0.000000e+00> : vector<16xf32>
    %135 = vector.multi_reduction <add>, %134, %cst_46 [1] : vector<16x16xf32> to vector<16xf32>
    %136 = vector.shape_cast %135 : vector<16xf32> to vector<16x1xf32>
    %137 = tpu.reciprocal %136 {approx = true} : vector<16x1xf32> -> vector<16x1xf32>
    %138 = vector.broadcast %137 : vector<16x1xf32> to vector<16x16xf32>
    %139 = arith.mulf %134, %138 : vector<16x16xf32>
    %cst_47 = arith.constant dense<0.000000e+00> : vector<16x8xf32>
    %140 = tpu.matmul %139, %127, %cst_47 {dimension_numbers = #tpu.dot_dimension_numbers<[1], [0], [0], [1], [0, 0, 1, 1], [], []>} : vector<16x16xf32>, vector<16x8xf32>, vector<16x8xf32> -> vector<16x8xf32>
    %c16_48 = arith.constant 16 : index
    %c24_49 = arith.constant 24 : index
    %141 = vector.load %arg7[%c16_48, %c24_49] : memref<32x32xf32, #tpu.memory_space<vmem>>, vector<16x8xf32>
    tpu.vector_store %arg7[%c16_48, %c24_49], %140 {strides = array<i32>} : memref<32x32xf32, #tpu.memory_space<vmem>>, vector<16x8xf32>,
    %c0_50 = arith.constant 0 : index
    %c0_51 = arith.constant 0 : index
    %142 = vector.load %arg5[%c0_50, %c0_51] : memref<3x32xf32, #tpu.memory_space<vmem>>, vector<1x32xf32>
    %c1 = arith.constant 1 : index
    %c0_52 = arith.constant 0 : index
    %143 = vector.load %arg5[%c1, %c0_52] : memref<3x32xf32, #tpu.memory_space<vmem>>, vector<1x32xf32>
    %c2 = arith.constant 2 : index
    %c0_53 = arith.constant 0 : index
    %144 = vector.load %arg5[%c2, %c0_53] : memref<3x32xf32, #tpu.memory_space<vmem>>, vector<1x32xf32>
    %c0_54 = arith.constant 0 : index
    %c0_55 = arith.constant 0 : index
    %145 = vector.load %arg7[%c0_54, %c0_55] : memref<32x32xf32, #tpu.memory_space<vmem>>, vector<32x32xf32>
    %c0_56 = arith.constant 0 : index
    %c0_57 = arith.constant 0 : index
    %146 = vector.load %arg4[%c0_56, %c0_57] : memref<32x32xf32, #tpu.memory_space<vmem>>, vector<32x32xf32>
    %cst_58 = arith.constant dense<0.000000e+00> : vector<32x32xf32>
    %147 = tpu.matmul %145, %146, %cst_58 {dimension_numbers = #tpu.dot_dimension_numbers<[1], [0], [0], [1], [0, 0, 1, 1], [], []>} : vector<32x32xf32>, vector<32x32xf32>, vector<32x32xf32> -> vector<32x32xf32>
    %148 = vector.broadcast %142 : vector<1x32xf32> to vector<32x32xf32>
    %149 = arith.addf %147, %148 : vector<32x32xf32>
    %150 = arith.addf %149, %0 : vector<32x32xf32>
    %cst_59 = arith.constant dense<0.000000e+00> : vector<32xf32>
    %151 = vector.multi_reduction <add>, %150, %cst_59 [1] : vector<32x32xf32> to vector<32xf32>
    %152 = vector.shape_cast %151 : vector<32xf32> to vector<32x1xf32>
    %cst_60 = arith.constant 3.200000e+01 : f32
    %153 = vector.broadcast %cst_60 : f32 to vector<32x1xf32>
    %154 = arith.divf %152, %153 : vector<32x1xf32>
    %155 = vector.broadcast %154 : vector<32x1xf32> to vector<32x32xf32>
    %156 = arith.subf %150, %155 : vector<32x32xf32>
    %157 = vector.broadcast %154 : vector<32x1xf32> to vector<32x32xf32>
    %158 = arith.subf %150, %157 : vector<32x32xf32>
    %159 = arith.mulf %156, %158 : vector<32x32xf32>
    %cst_61 = arith.constant dense<0.000000e+00> : vector<32xf32>
    %160 = vector.multi_reduction <add>, %159, %cst_61 [1] : vector<32x32xf32> to vector<32xf32>
    %161 = vector.shape_cast %160 : vector<32xf32> to vector<32x1xf32>
    %cst_62 = arith.constant 3.200000e+01 : f32
    %162 = vector.broadcast %cst_62 : f32 to vector<32x1xf32>
    %163 = arith.divf %161, %162 : vector<32x1xf32>
    %164 = vector.broadcast %154 : vector<32x1xf32> to vector<32x32xf32>
    %165 = arith.subf %150, %164 : vector<32x32xf32>
    %cst_63 = arith.constant 9.99999996E-13 : f32
    %166 = vector.broadcast %cst_63 : f32 to vector<32x1xf32>
    %167 = arith.addf %163, %166 : vector<32x1xf32>
    %168 = math.rsqrt %167 : vector<32x1xf32>
    %169 = vector.broadcast %168 : vector<32x1xf32> to vector<32x32xf32>
    %170 = arith.mulf %165, %169 : vector<32x32xf32>
    %171 = vector.broadcast %143 : vector<1x32xf32> to vector<32x32xf32>
    %172 = arith.mulf %170, %171 : vector<32x32xf32>
    %173 = vector.broadcast %144 : vector<1x32xf32> to vector<32x32xf32>
    %174 = arith.addf %172, %173 : vector<32x32xf32>
    %c0_64 = arith.constant 0 : index
    %c0_65 = arith.constant 0 : index
    %175 = vector.load %arg6[%c0_64, %c0_65] : memref<32x32xf32, #tpu.memory_space<vmem>>, vector<32x32xf32>
    tpu.vector_store %arg6[%c0_64, %c0_65], %174 {strides = array<i32>} : memref<32x32xf32, #tpu.memory_space<vmem>>, vector<32x32xf32>,
    return
  }
  func.func @transform_0(%arg0: i32) -> (i32, i32) {
    %c0_i32 = arith.constant 0 : i32
    %c0_i32_0 = arith.constant 0 : i32
    %c0_i32_1 = arith.constant 0 : i32
    return %c0_i32, %c0_i32_0 : i32, i32
  }
  func.func @transform_1(%arg0: i32) -> (i32, i32) {
    %c0_i32 = arith.constant 0 : i32
    %c0_i32_0 = arith.constant 0 : i32
    %c0_i32_1 = arith.constant 0 : i32
    return %c0_i32, %c0_i32_0 : i32, i32
  }
  func.func @transform_2(%arg0: i32) -> (i32, i32) {
    %c0_i32 = arith.constant 0 : i32
    %c0_i32_0 = arith.constant 0 : i32
    %c0_i32_1 = arith.constant 0 : i32
    return %c0_i32, %c0_i32_0 : i32, i32
  }
  func.func @transform_3(%arg0: i32) -> (i32, i32) {
    %c0_i32 = arith.constant 0 : i32
    %c0_i32_0 = arith.constant 0 : i32
    %c0_i32_1 = arith.constant 0 : i32
    return %c0_i32, %c0_i32_0 : i32, i32
  }
  func.func @transform_4(%arg0: i32) -> (i32, i32) {
    %c0_i32 = arith.constant 0 : i32
    %c0_i32_0 = arith.constant 0 : i32
    %c0_i32_1 = arith.constant 0 : i32
    return %c0_i32, %c0_i32_0 : i32, i32
  }
  func.func @transform_5(%arg0: i32) -> (i32, i32) {
    %c0_i32 = arith.constant 0 : i32
    %c0_i32_0 = arith.constant 0 : i32
    %c0_i32_1 = arith.constant 0 : i32
    return %c0_i32, %c0_i32_0 : i32, i32
  }
}

</mosaic_0001>

<llo_original>
// kernel: tpu_custom_call.1
$region0: #{tpu_custom_call.1}
  #allocation0 [shape = 'u32[]', space=smem, size = 0x4, offset = 0x4, fixed_abs, tag = 'smem constant byte address 0x4 - core index']
  #allocation1 [shape = 'u32[144,128]{1,0:T(1,128)}', space=vmem, size = 0x12000, scoped, tag = 'internal scratch']
  #allocation2 [shape = 'f32[32,32]{1,0:T(8,128)}', space=vmem, size = 0x4000, scoped, tag = 'scratch operand']
  %s0 = inlined_call_operand.hbm [shape: f32[32,32], index: 0, kind: input, shape index: {}]
  %s1 = inlined_call_operand.hbm [shape: f32[32,96], index: 1, kind: input, shape index: {}]
  %s2 = inlined_call_operand.vmem [shape: f32[1,96], index: 2, kind: input, shape index: {}]
  %s3 = inlined_call_operand.hbm [shape: f32[32,32], index: 3, kind: input, shape index: {}]
  %s4 = inlined_call_operand.vmem [shape: f32[3,32], index: 4, kind: input, shape index: {}]
  %s5 = inlined_call_operand.hbm [shape: f32[32,32], index: 5, kind: output, shape index: {}]
  %s6 = sld [smem:[#allocation0]]
  $region42: #{tpu_custom_call.1} parent=0
    _
  %s8 = ssub.s32 1, %s6
  %s9 = scalar_select 0, %s8, %s6
  $region1: #{tpu_custom_call.1} parent=0
    #allocation3 [shape = 'u8[16384]{0}', space=vmem, size = 0x4000, scoped, tag = 'input window, operand 0, single buffered']
    #allocation4 [shape = 's32[1]{0}', space=sflag, size = 0x4, scoped, tag = 'scoped memory for tpu_custom_call.1']
    #allocation5 [shape = 's32[1]{0}', space=sflag, size = 0x4, scoped, tag = 'scoped memory for tpu_custom_call.1']
    #allocation6 [shape = 'u8[16384]{0}', space=vmem, size = 0x4000, scoped, tag = 'input window, operand 1, single buffered']
    #allocation7 [shape = 's32[1]{0}', space=sflag, size = 0x4, scoped, tag = 'scoped memory for tpu_custom_call.1']
    #allocation8 [shape = 'u8[16384]{0}', space=vmem, size = 0x4000, scoped, tag = 'input window, operand 3, single buffered']
    #allocation9 [shape = 'u8[16384]{0}', space=vmem, size = 0x4000, scoped, tag = 'output window, operand 0, single buffered']
    %10 = vsyncpa [#allocation4], 0
    %11 = vsyncpa [#allocation7], 0
    %12 = vsyncpa [#allocation5], 0
    // Predicated region
    $region2: #{tpu_custom_call.1} parent=1 // pred_check
      _
    $region3: #{tpu_custom_call.1} parent=1 // pred_check_branch
      %14 = sbr.rel (0) target = $region5
    $region4: #{tpu_custom_call.1} parent=1 // pred_region
      %s16 = ssub.s32 512, 512
      %17 = vsyncadd [#allocation4], %s16
      %s18 = sshll.u32 [#allocation3], 4
      %s19 = int_to_ptr.vmem [resolvable:$true] %s18
      %24 = dma.hbm_to_vmem [thread:$0]  %s0, 512, %s19, [#allocation4], 128, 128, 8
    $region5: #{tpu_custom_call.1} parent=1 // pred_fallthru
      _
    // Predicated region
    $region6: #{tpu_custom_call.1} parent=1 // pred_check
      _
    $region7: #{tpu_custom_call.1} parent=1 // pred_check_branch
      %26 = sbr.rel (0) target = $region9
    $region8: #{tpu_custom_call.1} parent=1 // pred_region
      %s28 = ssub.s32 512, 512
      %29 = vsyncadd [#allocation7], %s28
      %s30 = sshll.u32 [#allocation6], 4
      %s31 = int_to_ptr.vmem [resolvable:$true] %s30
      %36 = dma.hbm_to_vmem [thread:$0]  %s1, 512, %s31, [#allocation7], 128, 128, 8
    $region9: #{tpu_custom_call.1} parent=1 // pred_fallthru
      _
    // Predicated region
    $region10: #{tpu_custom_call.1} parent=1 // pred_check
      _
    $region11: #{tpu_custom_call.1} parent=1 // pred_check_branch
      %38 = sbr.rel (0) target = $region13
    $region12: #{tpu_custom_call.1} parent=1 // pred_region
      _
    $region13: #{tpu_custom_call.1} parent=1 // pred_fallthru
      _
    // Predicated region
    $region14: #{tpu_custom_call.1} parent=1 // pred_check
      _
    $region15: #{tpu_custom_call.1} parent=1 // pred_check_branch
      %40 = sbr.rel (0) target = $region17
    $region16: #{tpu_custom_call.1} parent=1 // pred_region
      %s42 = ssub.s32 512, 512
      %43 = vsyncadd [#allocation7], %s42
      %s44 = sshll.u32 [#allocation8], 4
      %s45 = int_to_ptr.vmem [resolvable:$true] %s44
      %50 = dma.hbm_to_vmem [thread:$0]  %s3, 512, %s45, [#allocation7], 128, 128, 8
    $region17: #{tpu_custom_call.1} parent=1 // pred_fallthru
      _
    // Predicated region
    $region18: #{tpu_custom_call.1} parent=1 // pred_check
      _
    $region19: #{tpu_custom_call.1} parent=1 // pred_check_branch
      %52 = sbr.rel (0) target = $region21
    $region20: #{tpu_custom_call.1} parent=1 // pred_region
      _
    $region21: #{tpu_custom_call.1} parent=1 // pred_fallthru
      _
    // Predicated region
    $region22: #{tpu_custom_call.1} parent=1 // pred_check
      _
    $region23: #{tpu_custom_call.1} parent=1 // pred_check_branch
      %54 = sbr.rel (0) target = $region25
    $region24: #{tpu_custom_call.1} parent=1 // pred_region
      %55 = dma.done [#allocation4], 512
    $region25: #{tpu_custom_call.1} parent=1 // pred_fallthru
      _
    // Predicated region
    $region26: #{tpu_custom_call.1} parent=1 // pred_check
      _
    $region27: #{tpu_custom_call.1} parent=1 // pred_check_branch
      %57 = sbr.rel (0) target = $region29
    $region28: #{tpu_custom_call.1} parent=1 // pred_region
      %58 = dma.done [#allocation7], 512
    $region29: #{tpu_custom_call.1} parent=1 // pred_fallthru
      _
    // Predicated region
    $region30: #{tpu_custom_call.1} parent=1 // pred_check
      _
    $region31: #{tpu_custom_call.1} parent=1 // pred_check_branch
      %60 = sbr.rel (0) target = $region33
    $region32: #{tpu_custom_call.1} parent=1 // pred_region
      %61 = dma.done [#allocation7], 512
    $region33: #{tpu_custom_call.1} parent=1 // pred_fallthru
      _
    %v62 = vld [vmem:[#allocation3] sm:$0xff]
    %v63 = vld [vmem:[#allocation3 + $0x8] sm:$0xff]
    %v64 = vld [vmem:[#allocation3 + $0x10] sm:$0xff]
    %v65 = vld [vmem:[#allocation3 + $0x18] sm:$0xff]
    %v66 = vld [vmem:[#allocation6] sm:$0xff]
    %v67 = vld [vmem:[#allocation6 + $0x8] sm:$0xff]
    %v68 = vld [vmem:[#allocation6 + $0x10] sm:$0xff]
    %v69 = vld [vmem:[#allocation6 + $0x18] sm:$0xff]
    %v70 = vld [vmem:[%s2] sm:$0x1]
    %v72 = vlaneseq
    %v73 = vshrl.u32 %v72, 7
    %v74 = vsub.s32 0, %v73
    %v75 = vrot.slane %v70, %v74
    %vm77 = vcmask 261120
    %v79 = vsel %vm77, %v62, 0
    %v82 = vsel %vm77, %v63, 0
    %v85 = vsel %vm77, %v64, 0
    %v88 = vsel %vm77, %v65, 0
    %90 = vmatprep.subr.mxu0 0.0
    %91 = vmatpush1.msra.mxu0 %v66
    %92 = vmatprep.subr.mxu0 0.0
    %93 = vmatpush1.msra.mxu0 %v67
    %94 = vmatprep.subr.mxu0 0.0
    %95 = vmatpush1.msra.mxu0 %v68
    %96 = vmatprep.subr.mxu0 0.0
    %97 = vmatpush1.msra.mxu0 %v69
    %98 = vmatprep.subr.mxu0 0.0
    %99 = vmatpush1.msra.mxu0 0.0
    %100 = vmatprep.subr.mxu0 0.0
    %101 = vmatpush1.msra.mxu0 0.0
    %102 = vmatprep.subr.mxu0 0.0
    %103 = vmatpush1.msra.mxu0 0.0
    %104 = vmatprep.subr.mxu0 0.0
    %105 = vmatpush1.msra.mxu0 0.0
    %106 = vmatprep.subr.mxu0 0.0
    %107 = vmatpush1.msra.mxu0 0.0
    %108 = vmatprep.subr.mxu0 0.0
    %109 = vmatpush1.msra.mxu0 0.0
    %110 = vmatprep.subr.mxu0 0.0
    %111 = vmatpush1.msra.mxu0 0.0
    %112 = vmatprep.subr.mxu0 0.0
    %113 = vmatpush1.msra.mxu0 0.0
    %114 = vmatprep.subr.mxu0 0.0
    %115 = vmatpush1.msra.mxu0 0.0
    %116 = vmatprep.subr.mxu0 0.0
    %117 = vmatpush1.msra.mxu0 0.0
    %118 = vmatprep.subr.mxu0 0.0
    %119 = vmatpush1.msra.mxu0 0.0
    %120 = vmatprep.subr.mxu0 0.0
    %121 = vmatpush1.msra.mxu0 0.0
    %122 = vmatprep.subr.mxu0 0.0
    %123 = vmatpush1.msra.mxu0 0.0
    %124 = vmatprep.subr.mxu0 0.0
    %125 = vmatpush1.msra.mxu0 0.0
    %126 = vmatprep.subr.mxu0 0.0
    %127 = vmatpush1.msra.mxu0 0.0
    %128 = vmatprep.subr.mxu0 0.0
    %129 = vmatpush1.msra.mxu0 0.0
    %130 = vmatprep.subr.mxu0 0.0
    %131 = vmatpush1.msra.mxu0 0.0
    %132 = vmatprep.subr.mxu0 0.0
    %133 = vmatpush1.msra.mxu0 0.0
    %134 = vmatprep.subr.mxu0 0.0
    %135 = vmatpush1.msra.mxu0 0.0
    %136 = vmatprep.subr.mxu0 0.0
    %137 = vmatpush1.msra.mxu0 0.0
    %138 = vmatprep.subr.mxu0 0.0
    %139 = vmatpush1.msra.mxu0 0.0
    %140 = vmatprep.subr.mxu0 0.0
    %141 = vmatpush1.msra.mxu0 0.0
    %142 = vmatprep.subr.mxu0 0.0
    %143 = vmatpush1.msra.mxu0 0.0
    %144 = vmatprep.subr.mxu0 0.0
    %145 = vmatpush1.msra.mxu0 0.0
    %146 = vmatprep.subr.mxu0 0.0
    %147 = vmatpush1.msra.mxu0 0.0
    %148 = vmatprep.subr.mxu0 0.0
    %149 = vmatpush1.msra.mxu0 0.0
    %150 = vmatprep.subr.mxu0 0.0
    %151 = vmatpush1.msra.mxu0 0.0
    %152 = vmatprep.subr.mxu0 0.0
    %153 = vmatpush1.msra.mxu0 0.0
    %154 = vmatprep.mubr.f32.mxu0 0.0
    %155 = vmatmul.mubr.f32.gmra.mrb[0].mxu0 %v79
    %v156 = vpop.f32.mrb[0].mxu0
    %v157 = vadd.f32 %v75, %v156
    %v158 = vpop.f32.mrb[0].mxu0
    %159 = vmatprep.mubr.f32.mxu0 0.0
    %160 = vmatmul.mubr.f32.gmra.mrb[0].mxu0 %v82
    %v161 = vpop.f32.mrb[0].mxu0
    %v162 = vadd.f32 %v75, %v161
    %v163 = vpop.f32.mrb[0].mxu0
    %164 = vmatprep.mubr.f32.mxu0 0.0
    %165 = vmatmul.mubr.f32.gmra.mrb[0].mxu0 %v85
    %v166 = vpop.f32.mrb[0].mxu0
    %v167 = vadd.f32 %v75, %v166
    %v168 = vpop.f32.mrb[0].mxu0
    %169 = vmatprep.mubr.f32.mxu0 0.0
    %170 = vmatmul.mubr.f32.gmra.mrb[0].mxu0 %v88
    %v171 = vpop.f32.mrb[0].mxu0
    %v172 = vadd.f32 %v75, %v171
    %v173 = vpop.f32.mrb[0].mxu0
    %174 = vdwg.mxu0
    %177 = vrot.lane.b32.xlu0 %v157, 96
    %v178 = vpop.permute.xlu0 %177
    %179 = vrot.lane.b32.xlu0 %v162, 96
    %v180 = vpop.permute.xlu0 %179
    %vm181 = vcmask 64512
    %v182 = vsel %vm181, %v157, 0
    %v184 = vsel %vm181, %v162, 0
    %v186 = vsel %vm181, %v178, 0
    %v188 = vsel %vm181, %v180, 0
    %190 = vmatprep.subr.mxu0 0.0
    %191 = vmatpush1.xpose.msra.mxu0 %v186
    %192 = vmatprep.subr.mxu0 0.0
    %193 = vmatpush1.xpose.msra.mxu0 %v188
    %194 = vmatprep.subr.mxu0 0.0
    %195 = vmatpush1.xpose.msra.mxu0 0.0
    %196 = vmatprep.subr.mxu0 0.0
    %197 = vmatpush1.xpose.msra.mxu0 0.0
    %198 = vmatprep.subr.mxu0 0.0
    %199 = vmatpush1.xpose.msra.mxu0 0.0
    %200 = vmatprep.subr.mxu0 0.0
    %201 = vmatpush1.xpose.msra.mxu0 0.0
    %202 = vmatprep.subr.mxu0 0.0
    %203 = vmatpush1.xpose.msra.mxu0 0.0
    %204 = vmatprep.subr.mxu0 0.0
    %205 = vmatpush1.xpose.msra.mxu0 0.0
    %206 = vmatprep.subr.mxu0 0.0
    %207 = vmatpush1.xpose.msra.mxu0 0.0
    %208 = vmatprep.subr.mxu0 0.0
    %209 = vmatpush1.xpose.msra.mxu0 0.0
    %210 = vmatprep.subr.mxu0 0.0
    %211 = vmatpush1.xpose.msra.mxu0 0.0
    %212 = vmatprep.subr.mxu0 0.0
    %213 = vmatpush1.xpose.msra.mxu0 0.0
    %214 = vmatprep.subr.mxu0 0.0
    %215 = vmatpush1.xpose.msra.mxu0 0.0
    %216 = vmatprep.subr.mxu0 0.0
    %217 = vmatpush1.xpose.msra.mxu0 0.0
    %218 = vmatprep.subr.mxu0 0.0
    %219 = vmatpush1.xpose.msra.mxu0 0.0
    %220 = vmatprep.subr.mxu0 0.0
    %221 = vmatpush1.xpose.msra.mxu0 0.0
    %222 = vmatprep.subr.mxu0 0.0
    %223 = vmatpush1.xpose.msra.mxu0 0.0
    %224 = vmatprep.subr.mxu0 0.0
    %225 = vmatpush1.xpose.msra.mxu0 0.0
    %226 = vmatprep.subr.mxu0 0.0
    %227 = vmatpush1.xpose.msra.mxu0 0.0
    %228 = vmatprep.subr.mxu0 0.0
    %229 = vmatpush1.xpose.msra.mxu0 0.0
    %230 = vmatprep.subr.mxu0 0.0
    %231 = vmatpush1.xpose.msra.mxu0 0.0
    %232 = vmatprep.subr.mxu0 0.0
    %233 = vmatpush1.xpose.msra.mxu0 0.0
    %234 = vmatprep.subr.mxu0 0.0
    %235 = vmatpush1.xpose.msra.mxu0 0.0
    %236 = vmatprep.subr.mxu0 0.0
    %237 = vmatpush1.xpose.msra.mxu0 0.0
    %238 = vmatprep.subr.mxu0 0.0
    %239 = vmatpush1.xpose.msra.mxu0 0.0
    %240 = vmatprep.subr.mxu0 0.0
    %241 = vmatpush1.xpose.msra.mxu0 0.0
    %242 = vmatprep.subr.mxu0 0.0
    %243 = vmatpush1.xpose.msra.mxu0 0.0
    %244 = vmatprep.subr.mxu0 0.0
    %245 = vmatpush1.xpose.msra.mxu0 0.0
    %246 = vmatprep.subr.mxu0 0.0
    %247 = vmatpush1.xpose.msra.mxu0 0.0
    %248 = vmatprep.subr.mxu0 0.0
    %249 = vmatpush1.xpose.msra.mxu0 0.0
    %250 = vmatprep.subr.mxu0 0.0
    %251 = vmatpush1.xpose.msra.mxu0 0.0
    %252 = vmatprep.subr.mxu0 0.0
    %253 = vmatpush1.xpose.msra.mxu0 0.0
    %254 = vmatprep.mubr.f32.mxu0 0.0
    %255 = vmatmul.mubr.f32.gmra.mrb[0].mxu0 %v182
    %v256 = vpop.f32.mrb[0].mxu0
    %v257 = vadd.f32 0.0, %v256
    %v258 = vpop.f32.mrb[0].mxu0
    %259 = vmatprep.mubr.f32.mxu0 0.0
    %260 = vmatmul.mubr.f32.gmra.mrb[0].mxu0 %v184
    %v261 = vpop.f32.mrb[0].mxu0
    %v262 = vadd.f32 0.0, %v261
    %v263 = vpop.f32.mrb[0].mxu0
    %264 = vdwg.mxu0
    %vm265 = vcmask 130048
    %v266 = vsel %vm265, %v257, -inf
    %267 = vmax.xlane.f32.xlu0 %v266
    %v268 = vpop.xlane.xlu0 %267
    %v269 = vsel %vm265, %v262, -inf
    %270 = vmax.xlane.f32.xlu0 %v269
    %v271 = vpop.xlane.xlu0 %270
    %v272 = vsub.f32 %v257, %v268
    %v273 = vsub.f32 %v262, %v271
    %v274 = vmul.f32 %v272, 1.442695
    %v275 = vpow.pop %v274
    %v276 = vmul.f32 %v273, 1.442695
    %v277 = vpow.pop %v276
    %v278 = vsel %vm265, %v275, 0.0
    %279 = vadd.xlane.f32.xlu0 %v278
    %v280 = vpop.xlane.xlu0 %279
    %v281 = vsel %vm265, %v277, 0.0
    %282 = vadd.xlane.f32.xlu0 %v281
    %v283 = vpop.xlane.xlu0 %282
    %v284 = vrcp.pop %v280
    %v285 = vrcp.pop %v283
    %v286 = vmul.f32 %v275, %v284
    %v287 = vmul.f32 %v277, %v285
    %288 = vrot.lane.b32.xlu0 %v157, 64
    %v289 = vpop.permute.xlu0 %288
    %290 = vrot.lane.b32.xlu0 %v162, 64
    %v291 = vpop.permute.xlu0 %290
    %v295 = vsel %vm265, %v286, 0
    %v298 = vsel %vm265, %v287, 0
    %300 = vmatprep.subr.mxu0 0.0
    %301 = vmatpush1.msra.mxu0 %v289
    %302 = vmatprep.subr.mxu0 0.0
    %303 = vmatpush1.msra.mxu0 %v291
    %304 = vmatprep.subr.mxu0 0.0
    %305 = vmatpush1.msra.mxu0 0.0
    %306 = vmatprep.subr.mxu0 0.0
    %307 = vmatpush1.msra.mxu0 0.0
    %308 = vmatprep.subr.mxu0 0.0
    %309 = vmatpush1.msra.mxu0 0.0
    %310 = vmatprep.subr.mxu0 0.0
    %311 = vmatpush1.msra.mxu0 0.0
    %312 = vmatprep.subr.mxu0 0.0
    %313 = vmatpush1.msra.mxu0 0.0
    %314 = vmatprep.subr.mxu0 0.0
    %315 = vmatpush1.msra.mxu0 0.0
    %316 = vmatprep.subr.mxu0 0.0
    %317 = vmatpush1.msra.mxu0 0.0
    %318 = vmatprep.subr.mxu0 0.0
    %319 = vmatpush1.msra.mxu0 0.0
    %320 = vmatprep.subr.mxu0 0.0
    %321 = vmatpush1.msra.mxu0 0.0
    %322 = vmatprep.subr.mxu0 0.0
    %323 = vmatpush1.msra.mxu0 0.0
    %324 = vmatprep.subr.mxu0 0.0
    %325 = vmatpush1.msra.mxu0 0.0
    %326 = vmatprep.subr.mxu0 0.0
    %327 = vmatpush1.msra.mxu0 0.0
    %328 = vmatprep.subr.mxu0 0.0
    %329 = vmatpush1.msra.mxu0 0.0
    %330 = vmatprep.subr.mxu0 0.0
    %331 = vmatpush1.msra.mxu0 0.0
    %332 = vmatprep.subr.mxu0 0.0
    %333 = vmatpush1.msra.mxu0 0.0
    %334 = vmatprep.subr.mxu0 0.0
    %335 = vmatpush1.msra.mxu0 0.0
    %336 = vmatprep.subr.mxu0 0.0
    %337 = vmatpush1.msra.mxu0 0.0
    %338 = vmatprep.subr.mxu0 0.0
    %339 = vmatpush1.msra.mxu0 0.0
    %340 = vmatprep.subr.mxu0 0.0
    %341 = vmatpush1.msra.mxu0 0.0
    %342 = vmatprep.subr.mxu0 0.0
    %343 = vmatpush1.msra.mxu0 0.0
    %344 = vmatprep.subr.mxu0 0.0
    %345 = vmatpush1.msra.mxu0 0.0
    %346 = vmatprep.subr.mxu0 0.0
    %347 = vmatpush1.msra.mxu0 0.0
    %348 = vmatprep.subr.mxu0 0.0
    %349 = vmatpush1.msra.mxu0 0.0
    %350 = vmatprep.subr.mxu0 0.0
    %351 = vmatpush1.msra.mxu0 0.0
    %352 = vmatprep.subr.mxu0 0.0
    %353 = vmatpush1.msra.mxu0 0.0
    %354 = vmatprep.subr.mxu0 0.0
    %355 = vmatpush1.msra.mxu0 0.0
    %356 = vmatprep.subr.mxu0 0.0
    %357 = vmatpush1.msra.mxu0 0.0
    %358 = vmatprep.subr.mxu0 0.0
    %359 = vmatpush1.msra.mxu0 0.0
    %360 = vmatprep.subr.mxu0 0.0
    %361 = vmatpush1.msra.mxu0 0.0
    %362 = vmatprep.subr.mxu0 0.0
    %363 = vmatpush1.msra.mxu0 0.0
    %364 = vmatprep.mubr.f32.mxu0 0.0
    %365 = vmatmul.mubr.f32.gmra.mrb[0].mxu0 %v295
    %v366 = vpop.f32.mrb[0].mxu0
    %v367 = vadd.f32 0.0, %v366
    %v368 = vpop.f32.mrb[0].mxu0
    %369 = vmatprep.mubr.f32.mxu0 0.0
    %370 = vmatmul.mubr.f32.gmra.mrb[0].mxu0 %v298
    %v371 = vpop.f32.mrb[0].mxu0
    %v372 = vadd.f32 0.0, %v371
    %v373 = vpop.f32.mrb[0].mxu0
    %374 = vdwg.mxu0
    %375 = vst.msk [vmem:[#allocation2] sm:$0xff] %vm181, %v367
    %376 = vst.msk [vmem:[#allocation2 + $0x8] sm:$0xff] %vm181, %v372
    %377 = vrot.lane.b32.xlu0 %v157, 120
    %v378 = vpop.permute.xlu0 %377
    %379 = vrot.lane.b32.xlu0 %v162, 120
    %v380 = vpop.permute.xlu0 %379
    %381 = vrot.lane.b32.xlu0 %v157, 88
    %v382 = vpop.permute.xlu0 %381
    %383 = vrot.lane.b32.xlu0 %v162, 88
    %v384 = vpop.permute.xlu0 %383
    %v385 = vsel %vm181, %v378, 0
    %v387 = vsel %vm181, %v380, 0
    %v389 = vsel %vm181, %v382, 0
    %v391 = vsel %vm181, %v384, 0
    %393 = vmatprep.subr.mxu0 0.0
    %394 = vmatpush1.xpose.msra.mxu0 %v389
    %395 = vmatprep.subr.mxu0 0.0
    %396 = vmatpush1.xpose.msra.mxu0 %v391
    %397 = vmatprep.subr.mxu0 0.0
    %398 = vmatpush1.xpose.msra.mxu0 0.0
    %399 = vmatprep.subr.mxu0 0.0
    %400 = vmatpush1.xpose.msra.mxu0 0.0
    %401 = vmatprep.subr.mxu0 0.0
    %402 = vmatpush1.xpose.msra.mxu0 0.0
    %403 = vmatprep.subr.mxu0 0.0
    %404 = vmatpush1.xpose.msra.mxu0 0.0
    %405 = vmatprep.subr.mxu0 0.0
    %406 = vmatpush1.xpose.msra.mxu0 0.0
    %407 = vmatprep.subr.mxu0 0.0
    %408 = vmatpush1.xpose.msra.mxu0 0.0
    %409 = vmatprep.subr.mxu0 0.0
    %410 = vmatpush1.xpose.msra.mxu0 0.0
    %411 = vmatprep.subr.mxu0 0.0
    %412 = vmatpush1.xpose.msra.mxu0 0.0
    %413 = vmatprep.subr.mxu0 0.0
    %414 = vmatpush1.xpose.msra.mxu0 0.0
    %415 = vmatprep.subr.mxu0 0.0
    %416 = vmatpush1.xpose.msra.mxu0 0.0
    %417 = vmatprep.subr.mxu0 0.0
    %418 = vmatpush1.xpose.msra.mxu0 0.0
    %419 = vmatprep.subr.mxu0 0.0
    %420 = vmatpush1.xpose.msra.mxu0 0.0
    %421 = vmatprep.subr.mxu0 0.0
    %422 = vmatpush1.xpose.msra.mxu0 0.0
    %423 = vmatprep.subr.mxu0 0.0
    %424 = vmatpush1.xpose.msra.mxu0 0.0
    %425 = vmatprep.subr.mxu0 0.0
    %426 = vmatpush1.xpose.msra.mxu0 0.0
    %427 = vmatprep.subr.mxu0 0.0
    %428 = vmatpush1.xpose.msra.mxu0 0.0
    %429 = vmatprep.subr.mxu0 0.0
    %430 = vmatpush1.xpose.msra.mxu0 0.0
    %431 = vmatprep.subr.mxu0 0.0
    %432 = vmatpush1.xpose.msra.mxu0 0.0
    %433 = vmatprep.subr.mxu0 0.0
    %434 = vmatpush1.xpose.msra.mxu0 0.0
    %435 = vmatprep.subr.mxu0 0.0
    %436 = vmatpush1.xpose.msra.mxu0 0.0
    %437 = vmatprep.subr.mxu0 0.0
    %438 = vmatpush1.xpose.msra.mxu0 0.0
    %439 = vmatprep.subr.mxu0 0.0
    %440 = vmatpush1.xpose.msra.mxu0 0.0
    %441 = vmatprep.subr.mxu0 0.0
    %442 = vmatpush1.xpose.msra.mxu0 0.0
    %443 = vmatprep.subr.mxu0 0.0
    %444 = vmatpush1.xpose.msra.mxu0 0.0
    %445 = vmatprep.subr.mxu0 0.0
    %446 = vmatpush1.xpose.msra.mxu0 0.0
    %447 = vmatprep.subr.mxu0 0.0
    %448 = vmatpush1.xpose.msra.mxu0 0.0
    %449 = vmatprep.subr.mxu0 0.0
    %450 = vmatpush1.xpose.msra.mxu0 0.0
    %451 = vmatprep.subr.mxu0 0.0
    %452 = vmatpush1.xpose.msra.mxu0 0.0
    %453 = vmatprep.subr.mxu0 0.0
    %454 = vmatpush1.xpose.msra.mxu0 0.0
    %455 = vmatprep.subr.mxu0 0.0
    %456 = vmatpush1.xpose.msra.mxu0 0.0
    %457 = vmatprep.mubr.f32.mxu0 0.0
    %458 = vmatmul.mubr.f32.gmra.mrb[0].mxu0 %v385
    %v459 = vpop.f32.mrb[0].mxu0
    %v460 = vadd.f32 0.0, %v459
    %v461 = vpop.f32.mrb[0].mxu0
    %462 = vmatprep.mubr.f32.mxu0 0.0
    %463 = vmatmul.mubr.f32.gmra.mrb[0].mxu0 %v387
    %v464 = vpop.f32.mrb[0].mxu0
    %v465 = vadd.f32 0.0, %v464
    %v466 = vpop.f32.mrb[0].mxu0
    %467 = vdwg.mxu0
    %v468 = vsel %vm265, %v460, -inf
    %469 = vmax.xlane.f32.xlu0 %v468
    %v470 = vpop.xlane.xlu0 %469
    %v471 = vsel %vm265, %v465, -inf
    %472 = vmax.xlane.f32.xlu0 %v471
    %v473 = vpop.xlane.xlu0 %472
    %v474 = vsub.f32 %v460, %v470
    %v475 = vsub.f32 %v465, %v473
    %v476 = vmul.f32 %v474, 1.442695
    %v477 = vpow.pop %v476
    %v478 = vmul.f32 %v475, 1.442695
    %v479 = vpow.pop %v478
    %v480 = vsel %vm265, %v477, 0.0
    %481 = vadd.xlane.f32.xlu0 %v480
    %v482 = vpop.xlane.xlu0 %481
    %v483 = vsel %vm265, %v479, 0.0
    %484 = vadd.xlane.f32.xlu0 %v483
    %v485 = vpop.xlane.xlu0 %484
    %v486 = vrcp.pop %v482
    %v487 = vrcp.pop %v485
    %v488 = vmul.f32 %v477, %v486
    %v489 = vmul.f32 %v479, %v487
    %490 = vrot.lane.b32.xlu0 %v157, 56
    %v491 = vpop.permute.xlu0 %490
    %492 = vrot.lane.b32.xlu0 %v162, 56
    %v493 = vpop.permute.xlu0 %492
    %v497 = vsel %vm265, %v488, 0
    %v500 = vsel %vm265, %v489, 0
    %502 = vmatprep.subr.mxu0 0.0
    %503 = vmatpush1.msra.mxu0 %v491
    %504 = vmatprep.subr.mxu0 0.0
    %505 = vmatpush1.msra.mxu0 %v493
    %506 = vmatprep.subr.mxu0 0.0
    %507 = vmatpush1.msra.mxu0 0.0
    %508 = vmatprep.subr.mxu0 0.0
    %509 = vmatpush1.msra.mxu0 0.0
    %510 = vmatprep.subr.mxu0 0.0
    %511 = vmatpush1.msra.mxu0 0.0
    %512 = vmatprep.subr.mxu0 0.0
    %513 = vmatpush1.msra.mxu0 0.0
    %514 = vmatprep.subr.mxu0 0.0
    %515 = vmatpush1.msra.mxu0 0.0
    %516 = vmatprep.subr.mxu0 0.0
    %517 = vmatpush1.msra.mxu0 0.0
    %518 = vmatprep.subr.mxu0 0.0
    %519 = vmatpush1.msra.mxu0 0.0
    %520 = vmatprep.subr.mxu0 0.0
    %521 = vmatpush1.msra.mxu0 0.0
    %522 = vmatprep.subr.mxu0 0.0
    %523 = vmatpush1.msra.mxu0 0.0
    %524 = vmatprep.subr.mxu0 0.0
    %525 = vmatpush1.msra.mxu0 0.0
    %526 = vmatprep.subr.mxu0 0.0
    %527 = vmatpush1.msra.mxu0 0.0
    %528 = vmatprep.subr.mxu0 0.0
    %529 = vmatpush1.msra.mxu0 0.0
    %530 = vmatprep.subr.mxu0 0.0
    %531 = vmatpush1.msra.mxu0 0.0
    %532 = vmatprep.subr.mxu0 0.0
    %533 = vmatpush1.msra.mxu0 0.0
    %534 = vmatprep.subr.mxu0 0.0
    %535 = vmatpush1.msra.mxu0 0.0
    %536 = vmatprep.subr.mxu0 0.0
    %537 = vmatpush1.msra.mxu0 0.0
    %538 = vmatprep.subr.mxu0 0.0
    %539 = vmatpush1.msra.mxu0 0.0
    %540 = vmatprep.subr.mxu0 0.0
    %541 = vmatpush1.msra.mxu0 0.0
    %542 = vmatprep.subr.mxu0 0.0
    %543 = vmatpush1.msra.mxu0 0.0
    %544 = vmatprep.subr.mxu0 0.0
    %545 = vmatpush1.msra.mxu0 0.0
    %546 = vmatprep.subr.mxu0 0.0
    %547 = vmatpush1.msra.mxu0 0.0
    %548 = vmatprep.subr.mxu0 0.0
    %549 = vmatpush1.msra.mxu0 0.0
    %550 = vmatprep.subr.mxu0 0.0
    %551 = vmatpush1.msra.mxu0 0.0
    %552 = vmatprep.subr.mxu0 0.0
    %553 = vmatpush1.msra.mxu0 0.0
    %554 = vmatprep.subr.mxu0 0.0
    %555 = vmatpush1.msra.mxu0 0.0
    %556 = vmatprep.subr.mxu0 0.0
    %557 = vmatpush1.msra.mxu0 0.0
    %558 = vmatprep.subr.mxu0 0.0
    %559 = vmatpush1.msra.mxu0 0.0
    %560 = vmatprep.subr.mxu0 0.0
    %561 = vmatpush1.msra.mxu0 0.0
    %562 = vmatprep.subr.mxu0 0.0
    %563 = vmatpush1.msra.mxu0 0.0
    %564 = vmatprep.subr.mxu0 0.0
    %565 = vmatpush1.msra.mxu0 0.0
    %566 = vmatprep.mubr.f32.mxu0 0.0
    %567 = vmatmul.mubr.f32.gmra.mrb[0].mxu0 %v497
    %v568 = vpop.f32.mrb[0].mxu0
    %v569 = vadd.f32 0.0, %v568
    %v570 = vpop.f32.mrb[0].mxu0
    %571 = vmatprep.mubr.f32.mxu0 0.0
    %572 = vmatmul.mubr.f32.gmra.mrb[0].mxu0 %v500
    %v573 = vpop.f32.mrb[0].mxu0
    %v574 = vadd.f32 0.0, %v573
    %v575 = vpop.f32.mrb[0].mxu0
    %576 = vdwg.mxu0
    %579 = vrot.lane.b32.xlu0 %v569, 8
    %v580 = vpop.permute.xlu0 %579
    %581 = vrot.lane.b32.xlu0 %v574, 8
    %v582 = vpop.permute.xlu0 %581
    %vm585 = vcmask 130112
    %586 = vst.msk [vmem:[#allocation2] sm:$0xff] %vm585, %v580
    %587 = vst.msk [vmem:[#allocation2 + $0x8] sm:$0xff] %vm585, %v582
    %588 = vrot.lane.b32.xlu0 %v157, 112
    %v589 = vpop.permute.xlu0 %588
    %590 = vrot.lane.b32.xlu0 %v162, 112
    %v591 = vpop.permute.xlu0 %590
    %592 = vrot.lane.b32.xlu0 %v157, 80
    %v593 = vpop.permute.xlu0 %592
    %594 = vrot.lane.b32.xlu0 %v162, 80
    %v595 = vpop.permute.xlu0 %594
    %v596 = vsel %vm181, %v589, 0
    %v598 = vsel %vm181, %v591, 0
    %v600 = vsel %vm181, %v593, 0
    %v602 = vsel %vm181, %v595, 0
    %604 = vmatprep.subr.mxu0 0.0
    %605 = vmatpush1.xpose.msra.mxu0 %v600
    %606 = vmatprep.subr.mxu0 0.0
    %607 = vmatpush1.xpose.msra.mxu0 %v602
    %608 = vmatprep.subr.mxu0 0.0
    %609 = vmatpush1.xpose.msra.mxu0 0.0
    %610 = vmatprep.subr.mxu0 0.0
    %611 = vmatpush1.xpose.msra.mxu0 0.0
    %612 = vmatprep.subr.mxu0 0.0
    %613 = vmatpush1.xpose.msra.mxu0 0.0
    %614 = vmatprep.subr.mxu0 0.0
    %615 = vmatpush1.xpose.msra.mxu0 0.0
    %616 = vmatprep.subr.mxu0 0.0
    %617 = vmatpush1.xpose.msra.mxu0 0.0
    %618 = vmatprep.subr.mxu0 0.0
    %619 = vmatpush1.xpose.msra.mxu0 0.0
    %620 = vmatprep.subr.mxu0 0.0
    %621 = vmatpush1.xpose.msra.mxu0 0.0
    %622 = vmatprep.subr.mxu0 0.0
    %623 = vmatpush1.xpose.msra.mxu0 0.0
    %624 = vmatprep.subr.mxu0 0.0
    %625 = vmatpush1.xpose.msra.mxu0 0.0
    %626 = vmatprep.subr.mxu0 0.0
    %627 = vmatpush1.xpose.msra.mxu0 0.0
    %628 = vmatprep.subr.mxu0 0.0
    %629 = vmatpush1.xpose.msra.mxu0 0.0
    %630 = vmatprep.subr.mxu0 0.0
    %631 = vmatpush1.xpose.msra.mxu0 0.0
    %632 = vmatprep.subr.mxu0 0.0
    %633 = vmatpush1.xpose.msra.mxu0 0.0
    %634 = vmatprep.subr.mxu0 0.0
    %635 = vmatpush1.xpose.msra.mxu0 0.0
    %636 = vmatprep.subr.mxu0 0.0
    %637 = vmatpush1.xpose.msra.mxu0 0.0
    %638 = vmatprep.subr.mxu0 0.0
    %639 = vmatpush1.xpose.msra.mxu0 0.0
    %640 = vmatprep.subr.mxu0 0.0
    %641 = vmatpush1.xpose.msra.mxu0 0.0
    %642 = vmatprep.subr.mxu0 0.0
    %643 = vmatpush1.xpose.msra.mxu0 0.0
    %644 = vmatprep.subr.mxu0 0.0
    %645 = vmatpush1.xpose.msra.mxu0 0.0
    %646 = vmatprep.subr.mxu0 0.0
    %647 = vmatpush1.xpose.msra.mxu0 0.0
    %648 = vmatprep.subr.mxu0 0.0
    %649 = vmatpush1.xpose.msra.mxu0 0.0
    %650 = vmatprep.subr.mxu0 0.0
    %651 = vmatpush1.xpose.msra.mxu0 0.0
    %652 = vmatprep.subr.mxu0 0.0
    %653 = vmatpush1.xpose.msra.mxu0 0.0
    %654 = vmatprep.subr.mxu0 0.0
    %655 = vmatpush1.xpose.msra.mxu0 0.0
    %656 = vmatprep.subr.mxu0 0.0
    %657 = vmatpush1.xpose.msra.mxu0 0.0
    %658 = vmatprep.subr.mxu0 0.0
    %659 = vmatpush1.xpose.msra.mxu0 0.0
    %660 = vmatprep.subr.mxu0 0.0
    %661 = vmatpush1.xpose.msra.mxu0 0.0
    %662 = vmatprep.subr.mxu0 0.0
    %663 = vmatpush1.xpose.msra.mxu0 0.0
    %664 = vmatprep.subr.mxu0 0.0
    %665 = vmatpush1.xpose.msra.mxu0 0.0
    %666 = vmatprep.subr.mxu0 0.0
    %667 = vmatpush1.xpose.msra.mxu0 0.0
    %668 = vmatprep.mubr.f32.mxu0 0.0
    %669 = vmatmul.mubr.f32.gmra.mrb[0].mxu0 %v596
    %v670 = vpop.f32.mrb[0].mxu0
    %v671 = vadd.f32 0.0, %v670
    %v672 = vpop.f32.mrb[0].mxu0
    %673 = vmatprep.mubr.f32.mxu0 0.0
    %674 = vmatmul.mubr.f32.gmra.mrb[0].mxu0 %v598
    %v675 = vpop.f32.mrb[0].mxu0
    %v676 = vadd.f32 0.0, %v675
    %v677 = vpop.f32.mrb[0].mxu0
    %678 = vdwg.mxu0
    %v679 = vsel %vm265, %v671, -inf
    %680 = vmax.xlane.f32.xlu0 %v679
    %v681 = vpop.xlane.xlu0 %680
    %v682 = vsel %vm265, %v676, -inf
    %683 = vmax.xlane.f32.xlu0 %v682
    %v684 = vpop.xlane.xlu0 %683
    %v685 = vsub.f32 %v671, %v681
    %v686 = vsub.f32 %v676, %v684
    %v687 = vmul.f32 %v685, 1.442695
    %v688 = vpow.pop %v687
    %v689 = vmul.f32 %v686, 1.442695
    %v690 = vpow.pop %v689
    %v691 = vsel %vm265, %v688, 0.0
    %692 = vadd.xlane.f32.xlu0 %v691
    %v693 = vpop.xlane.xlu0 %692
    %v694 = vsel %vm265, %v690, 0.0
    %695 = vadd.xlane.f32.xlu0 %v694
    %v696 = vpop.xlane.xlu0 %695
    %v697 = vrcp.pop %v693
    %v698 = vrcp.pop %v696
    %v699 = vmul.f32 %v688, %v697
    %v700 = vmul.f32 %v690, %v698
    %701 = vrot.lane.b32.xlu0 %v157, 48
    %v702 = vpop.permute.xlu0 %701
    %703 = vrot.lane.b32.xlu0 %v162, 48
    %v704 = vpop.permute.xlu0 %703
    %v708 = vsel %vm265, %v699, 0
    %v711 = vsel %vm265, %v700, 0
    %713 = vmatprep.subr.mxu0 0.0
    %714 = vmatpush1.msra.mxu0 %v702
    %715 = vmatprep.subr.mxu0 0.0
    %716 = vmatpush1.msra.mxu0 %v704
    %717 = vmatprep.subr.mxu0 0.0
    %718 = vmatpush1.msra.mxu0 0.0
    %719 = vmatprep.subr.mxu0 0.0
    %720 = vmatpush1.msra.mxu0 0.0
    %721 = vmatprep.subr.mxu0 0.0
    %722 = vmatpush1.msra.mxu0 0.0
    %723 = vmatprep.subr.mxu0 0.0
    %724 = vmatpush1.msra.mxu0 0.0
    %725 = vmatprep.subr.mxu0 0.0
    %726 = vmatpush1.msra.mxu0 0.0
    %727 = vmatprep.subr.mxu0 0.0
    %728 = vmatpush1.msra.mxu0 0.0
    %729 = vmatprep.subr.mxu0 0.0
    %730 = vmatpush1.msra.mxu0 0.0
    %731 = vmatprep.subr.mxu0 0.0
    %732 = vmatpush1.msra.mxu0 0.0
    %733 = vmatprep.subr.mxu0 0.0
    %734 = vmatpush1.msra.mxu0 0.0
    %735 = vmatprep.subr.mxu0 0.0
    %736 = vmatpush1.msra.mxu0 0.0
    %737 = vmatprep.subr.mxu0 0.0
    %738 = vmatpush1.msra.mxu0 0.0
    %739 = vmatprep.subr.mxu0 0.0
    %740 = vmatpush1.msra.mxu0 0.0
    %741 = vmatprep.subr.mxu0 0.0
    %742 = vmatpush1.msra.mxu0 0.0
    %743 = vmatprep.subr.mxu0 0.0
    %744 = vmatpush1.msra.mxu0 0.0
    %745 = vmatprep.subr.mxu0 0.0
    %746 = vmatpush1.msra.mxu0 0.0
    %747 = vmatprep.subr.mxu0 0.0
    %748 = vmatpush1.msra.mxu0 0.0
    %749 = vmatprep.subr.mxu0 0.0
    %750 = vmatpush1.msra.mxu0 0.0
    %751 = vmatprep.subr.mxu0 0.0
    %752 = vmatpush1.msra.mxu0 0.0
    %753 = vmatprep.subr.mxu0 0.0
    %754 = vmatpush1.msra.mxu0 0.0
    %755 = vmatprep.subr.mxu0 0.0
    %756 = vmatpush1.msra.mxu0 0.0
    %757 = vmatprep.subr.mxu0 0.0
    %758 = vmatpush1.msra.mxu0 0.0
    %759 = vmatprep.subr.mxu0 0.0
    %760 = vmatpush1.msra.mxu0 0.0
    %761 = vmatprep.subr.mxu0 0.0
    %762 = vmatpush1.msra.mxu0 0.0
    %763 = vmatprep.subr.mxu0 0.0
    %764 = vmatpush1.msra.mxu0 0.0
    %765 = vmatprep.subr.mxu0 0.0
    %766 = vmatpush1.msra.mxu0 0.0
    %767 = vmatprep.subr.mxu0 0.0
    %768 = vmatpush1.msra.mxu0 0.0
    %769 = vmatprep.subr.mxu0 0.0
    %770 = vmatpush1.msra.mxu0 0.0
    %771 = vmatprep.subr.mxu0 0.0
    %772 = vmatpush1.msra.mxu0 0.0
    %773 = vmatprep.subr.mxu0 0.0
    %774 = vmatpush1.msra.mxu0 0.0
    %775 = vmatprep.subr.mxu0 0.0
    %776 = vmatpush1.msra.mxu0 0.0
    %777 = vmatprep.mubr.f32.mxu0 0.0
    %778 = vmatmul.mubr.f32.gmra.mrb[0].mxu0 %v708
    %v779 = vpop.f32.mrb[0].mxu0
    %v780 = vadd.f32 0.0, %v779
    %v781 = vpop.f32.mrb[0].mxu0
    %782 = vmatprep.mubr.f32.mxu0 0.0
    %783 = vmatmul.mubr.f32.gmra.mrb[0].mxu0 %v711
    %v784 = vpop.f32.mrb[0].mxu0
    %v785 = vadd.f32 0.0, %v784
    %v786 = vpop.f32.mrb[0].mxu0
    %787 = vdwg.mxu0
    %790 = vrot.lane.b32.xlu0 %v780, 16
    %v791 = vpop.permute.xlu0 %790
    %792 = vrot.lane.b32.xlu0 %v785, 16
    %v793 = vpop.permute.xlu0 %792
    %vm796 = vcmask 195712
    %797 = vst.msk [vmem:[#allocation2] sm:$0xff] %vm796, %v791
    %798 = vst.msk [vmem:[#allocation2 + $0x8] sm:$0xff] %vm796, %v793
    %799 = vrot.lane.b32.xlu0 %v157, 104
    %v800 = vpop.permute.xlu0 %799
    %801 = vrot.lane.b32.xlu0 %v162, 104
    %v802 = vpop.permute.xlu0 %801
    %803 = vrot.lane.b32.xlu0 %v157, 72
    %v804 = vpop.permute.xlu0 %803
    %805 = vrot.lane.b32.xlu0 %v162, 72
    %v806 = vpop.permute.xlu0 %805
    %v807 = vsel %vm181, %v800, 0
    %v809 = vsel %vm181, %v802, 0
    %v811 = vsel %vm181, %v804, 0
    %v813 = vsel %vm181, %v806, 0
    %815 = vmatprep.subr.mxu0 0.0
    %816 = vmatpush1.xpose.msra.mxu0 %v811
    %817 = vmatprep.subr.mxu0 0.0
    %818 = vmatpush1.xpose.msra.mxu0 %v813
    %819 = vmatprep.subr.mxu0 0.0
    %820 = vmatpush1.xpose.msra.mxu0 0.0
    %821 = vmatprep.subr.mxu0 0.0
    %822 = vmatpush1.xpose.msra.mxu0 0.0
    %823 = vmatprep.subr.mxu0 0.0
    %824 = vmatpush1.xpose.msra.mxu0 0.0
    %825 = vmatprep.subr.mxu0 0.0
    %826 = vmatpush1.xpose.msra.mxu0 0.0
    %827 = vmatprep.subr.mxu0 0.0
    %828 = vmatpush1.xpose.msra.mxu0 0.0
    %829 = vmatprep.subr.mxu0 0.0
    %830 = vmatpush1.xpose.msra.mxu0 0.0
    %831 = vmatprep.subr.mxu0 0.0
    %832 = vmatpush1.xpose.msra.mxu0 0.0
    %833 = vmatprep.subr.mxu0 0.0
    %834 = vmatpush1.xpose.msra.mxu0 0.0
    %835 = vmatprep.subr.mxu0 0.0
    %836 = vmatpush1.xpose.msra.mxu0 0.0
    %837 = vmatprep.subr.mxu0 0.0
    %838 = vmatpush1.xpose.msra.mxu0 0.0
    %839 = vmatprep.subr.mxu0 0.0
    %840 = vmatpush1.xpose.msra.mxu0 0.0
    %841 = vmatprep.subr.mxu0 0.0
    %842 = vmatpush1.xpose.msra.mxu0 0.0
    %843 = vmatprep.subr.mxu0 0.0
    %844 = vmatpush1.xpose.msra.mxu0 0.0
    %845 = vmatprep.subr.mxu0 0.0
    %846 = vmatpush1.xpose.msra.mxu0 0.0
    %847 = vmatprep.subr.mxu0 0.0
    %848 = vmatpush1.xpose.msra.mxu0 0.0
    %849 = vmatprep.subr.mxu0 0.0
    %850 = vmatpush1.xpose.msra.mxu0 0.0
    %851 = vmatprep.subr.mxu0 0.0
    %852 = vmatpush1.xpose.msra.mxu0 0.0
    %853 = vmatprep.subr.mxu0 0.0
    %854 = vmatpush1.xpose.msra.mxu0 0.0
    %855 = vmatprep.subr.mxu0 0.0
    %856 = vmatpush1.xpose.msra.mxu0 0.0
    %857 = vmatprep.subr.mxu0 0.0
    %858 = vmatpush1.xpose.msra.mxu0 0.0
    %859 = vmatprep.subr.mxu0 0.0
    %860 = vmatpush1.xpose.msra.mxu0 0.0
    %861 = vmatprep.subr.mxu0 0.0
    %862 = vmatpush1.xpose.msra.mxu0 0.0
    %863 = vmatprep.subr.mxu0 0.0
    %864 = vmatpush1.xpose.msra.mxu0 0.0
    %865 = vmatprep.subr.mxu0 0.0
    %866 = vmatpush1.xpose.msra.mxu0 0.0
    %867 = vmatprep.subr.mxu0 0.0
    %868 = vmatpush1.xpose.msra.mxu0 0.0
    %869 = vmatprep.subr.mxu0 0.0
    %870 = vmatpush1.xpose.msra.mxu0 0.0
    %871 = vmatprep.subr.mxu0 0.0
    %872 = vmatpush1.xpose.msra.mxu0 0.0
    %873 = vmatprep.subr.mxu0 0.0
    %874 = vmatpush1.xpose.msra.mxu0 0.0
    %875 = vmatprep.subr.mxu0 0.0
    %876 = vmatpush1.xpose.msra.mxu0 0.0
    %877 = vmatprep.subr.mxu0 0.0
    %878 = vmatpush1.xpose.msra.mxu0 0.0
    %879 = vmatprep.mubr.f32.mxu0 0.0
    %880 = vmatmul.mubr.f32.gmra.mrb[0].mxu0 %v807
    %v881 = vpop.f32.mrb[0].mxu0
    %v882 = vadd.f32 0.0, %v881
    %v883 = vpop.f32.mrb[0].mxu0
    %884 = vmatprep.mubr.f32.mxu0 0.0
    %885 = vmatmul.mubr.f32.gmra.mrb[0].mxu0 %v809
    %v886 = vpop.f32.mrb[0].mxu0
    %v887 = vadd.f32 0.0, %v886
    %v888 = vpop.f32.mrb[0].mxu0
    %889 = vdwg.mxu0
    %v890 = vsel %vm265, %v882, -inf
    %891 = vmax.xlane.f32.xlu0 %v890
    %v892 = vpop.xlane.xlu0 %891
    %v893 = vsel %vm265, %v887, -inf
    %894 = vmax.xlane.f32.xlu0 %v893
    %v895 = vpop.xlane.xlu0 %894
    %v896 = vsub.f32 %v882, %v892
    %v897 = vsub.f32 %v887, %v895
    %v898 = vmul.f32 %v896, 1.442695
    %v899 = vpow.pop %v898
    %v900 = vmul.f32 %v897, 1.442695
    %v901 = vpow.pop %v900
    %v902 = vsel %vm265, %v899, 0.0
    %903 = vadd.xlane.f32.xlu0 %v902
    %v904 = vpop.xlane.xlu0 %903
    %v905 = vsel %vm265, %v901, 0.0
    %906 = vadd.xlane.f32.xlu0 %v905
    %v907 = vpop.xlane.xlu0 %906
    %v908 = vrcp.pop %v904
    %v909 = vrcp.pop %v907
    %v910 = vmul.f32 %v899, %v908
    %v911 = vmul.f32 %v901, %v909
    %912 = vrot.lane.b32.xlu0 %v157, 40
    %v913 = vpop.permute.xlu0 %912
    %914 = vrot.lane.b32.xlu0 %v162, 40
    %v915 = vpop.permute.xlu0 %914
    %v919 = vsel %vm265, %v910, 0
    %v922 = vsel %vm265, %v911, 0
    %924 = vmatprep.subr.mxu0 0.0
    %925 = vmatpush1.msra.mxu0 %v913
    %926 = vmatprep.subr.mxu0 0.0
    %927 = vmatpush1.msra.mxu0 %v915
    %928 = vmatprep.subr.mxu0 0.0
    %929 = vmatpush1.msra.mxu0 0.0
    %930 = vmatprep.subr.mxu0 0.0
    %931 = vmatpush1.msra.mxu0 0.0
    %932 = vmatprep.subr.mxu0 0.0
    %933 = vmatpush1.msra.mxu0 0.0
    %934 = vmatprep.subr.mxu0 0.0
    %935 = vmatpush1.msra.mxu0 0.0
    %936 = vmatprep.subr.mxu0 0.0
    %937 = vmatpush1.msra.mxu0 0.0
    %938 = vmatprep.subr.mxu0 0.0
    %939 = vmatpush1.msra.mxu0 0.0
    %940 = vmatprep.subr.mxu0 0.0
    %941 = vmatpush1.msra.mxu0 0.0
    %942 = vmatprep.subr.mxu0 0.0
    %943 = vmatpush1.msra.mxu0 0.0
    %944 = vmatprep.subr.mxu0 0.0
    %945 = vmatpush1.msra.mxu0 0.0
    %946 = vmatprep.subr.mxu0 0.0
    %947 = vmatpush1.msra.mxu0 0.0
    %948 = vmatprep.subr.mxu0 0.0
    %949 = vmatpush1.msra.mxu0 0.0
    %950 = vmatprep.subr.mxu0 0.0
    %951 = vmatpush1.msra.mxu0 0.0
    %952 = vmatprep.subr.mxu0 0.0
    %953 = vmatpush1.msra.mxu0 0.0
    %954 = vmatprep.subr.mxu0 0.0
    %955 = vmatpush1.msra.mxu0 0.0
    %956 = vmatprep.subr.mxu0 0.0
    %957 = vmatpush1.msra.mxu0 0.0
    %958 = vmatprep.subr.mxu0 0.0
    %959 = vmatpush1.msra.mxu0 0.0
    %960 = vmatprep.subr.mxu0 0.0
    %961 = vmatpush1.msra.mxu0 0.0
    %962 = vmatprep.subr.mxu0 0.0
    %963 = vmatpush1.msra.mxu0 0.0
    %964 = vmatprep.subr.mxu0 0.0
    %965 = vmatpush1.msra.mxu0 0.0
    %966 = vmatprep.subr.mxu0 0.0
    %967 = vmatpush1.msra.mxu0 0.0
    %968 = vmatprep.subr.mxu0 0.0
    %969 = vmatpush1.msra.mxu0 0.0
    %970 = vmatprep.subr.mxu0 0.0
    %971 = vmatpush1.msra.mxu0 0.0
    %972 = vmatprep.subr.mxu0 0.0
    %973 = vmatpush1.msra.mxu0 0.0
    %974 = vmatprep.subr.mxu0 0.0
    %975 = vmatpush1.msra.mxu0 0.0
    %976 = vmatprep.subr.mxu0 0.0
    %977 = vmatpush1.msra.mxu0 0.0
    %978 = vmatprep.subr.mxu0 0.0
    %979 = vmatpush1.msra.mxu0 0.0
    %980 = vmatprep.subr.mxu0 0.0
    %981 = vmatpush1.msra.mxu0 0.0
    %982 = vmatprep.subr.mxu0 0.0
    %983 = vmatpush1.msra.mxu0 0.0
    %984 = vmatprep.subr.mxu0 0.0
    %985 = vmatpush1.msra.mxu0 0.0
    %986 = vmatprep.subr.mxu0 0.0
    %987 = vmatpush1.msra.mxu0 0.0
    %988 = vmatprep.mubr.f32.mxu0 0.0
    %989 = vmatmul.mubr.f32.gmra.mrb[0].mxu0 %v919
    %v990 = vpop.f32.mrb[0].mxu0
    %v991 = vadd.f32 0.0, %v990
    %v992 = vpop.f32.mrb[0].mxu0
    %993 = vmatprep.mubr.f32.mxu0 0.0
    %994 = vmatmul.mubr.f32.gmra.mrb[0].mxu0 %v922
    %v995 = vpop.f32.mrb[0].mxu0
    %v996 = vadd.f32 0.0, %v995
    %v997 = vpop.f32.mrb[0].mxu0
    %998 = vdwg.mxu0
    %1001 = vrot.lane.b32.xlu0 %v991, 24
    %v1002 = vpop.permute.xlu0 %1001
    %1003 = vrot.lane.b32.xlu0 %v996, 24
    %v1004 = vpop.permute.xlu0 %1003
    %vm1007 = vcmask 261312
    %1008 = vst.msk [vmem:[#allocation2] sm:$0xff] %vm1007, %v1002
    %1009 = vst.msk [vmem:[#allocation2 + $0x8] sm:$0xff] %vm1007, %v1004
    %1012 = vrot.lane.b32.xlu0 %v167, 96
    %v1013 = vpop.permute.xlu0 %1012
    %1014 = vrot.lane.b32.xlu0 %v172, 96
    %v1015 = vpop.permute.xlu0 %1014
    %v1016 = vsel %vm181, %v167, 0
    %v1018 = vsel %vm181, %v172, 0
    %v1020 = vsel %vm181, %v1013, 0
    %v1022 = vsel %vm181, %v1015, 0
    %1024 = vmatprep.subr.mxu0 0.0
    %1025 = vmatpush1.xpose.msra.mxu0 %v1020
    %1026 = vmatprep.subr.mxu0 0.0
    %1027 = vmatpush1.xpose.msra.mxu0 %v1022
    %1028 = vmatprep.subr.mxu0 0.0
    %1029 = vmatpush1.xpose.msra.mxu0 0.0
    %1030 = vmatprep.subr.mxu0 0.0
    %1031 = vmatpush1.xpose.msra.mxu0 0.0
    %1032 = vmatprep.subr.mxu0 0.0
    %1033 = vmatpush1.xpose.msra.mxu0 0.0
    %1034 = vmatprep.subr.mxu0 0.0
    %1035 = vmatpush1.xpose.msra.mxu0 0.0
    %1036 = vmatprep.subr.mxu0 0.0
    %1037 = vmatpush1.xpose.msra.mxu0 0.0
    %1038 = vmatprep.subr.mxu0 0.0
    %1039 = vmatpush1.xpose.msra.mxu0 0.0
    %1040 = vmatprep.subr.mxu0 0.0
    %1041 = vmatpush1.xpose.msra.mxu0 0.0
    %1042 = vmatprep.subr.mxu0 0.0
    %1043 = vmatpush1.xpose.msra.mxu0 0.0
    %1044 = vmatprep.subr.mxu0 0.0
    %1045 = vmatpush1.xpose.msra.mxu0 0.0
    %1046 = vmatprep.subr.mxu0 0.0
    %1047 = vmatpush1.xpose.msra.mxu0 0.0
    %1048 = vmatprep.subr.mxu0 0.0
    %1049 = vmatpush1.xpose.msra.mxu0 0.0
    %1050 = vmatprep.subr.mxu0 0.0
    %1051 = vmatpush1.xpose.msra.mxu0 0.0
    %1052 = vmatprep.subr.mxu0 0.0
    %1053 = vmatpush1.xpose.msra.mxu0 0.0
    %1054 = vmatprep.subr.mxu0 0.0
    %1055 = vmatpush1.xpose.msra.mxu0 0.0
    %1056 = vmatprep.subr.mxu0 0.0
    %1057 = vmatpush1.xpose.msra.mxu0 0.0
    %1058 = vmatprep.subr.mxu0 0.0
    %1059 = vmatpush1.xpose.msra.mxu0 0.0
    %1060 = vmatprep.subr.mxu0 0.0
    %1061 = vmatpush1.xpose.msra.mxu0 0.0
    %1062 = vmatprep.subr.mxu0 0.0
    %1063 = vmatpush1.xpose.msra.mxu0 0.0
    %1064 = vmatprep.subr.mxu0 0.0
    %1065 = vmatpush1.xpose.msra.mxu0 0.0
    %1066 = vmatprep.subr.mxu0 0.0
    %1067 = vmatpush1.xpose.msra.mxu0 0.0
    %1068 = vmatprep.subr.mxu0 0.0
    %1069 = vmatpush1.xpose.msra.mxu0 0.0
    %1070 = vmatprep.subr.mxu0 0.0
    %1071 = vmatpush1.xpose.msra.mxu0 0.0
    %1072 = vmatprep.subr.mxu0 0.0
    %1073 = vmatpush1.xpose.msra.mxu0 0.0
    %1074 = vmatprep.subr.mxu0 0.0
    %1075 = vmatpush1.xpose.msra.mxu0 0.0
    %1076 = vmatprep.subr.mxu0 0.0
    %1077 = vmatpush1.xpose.msra.mxu0 0.0
    %1078 = vmatprep.subr.mxu0 0.0
    %1079 = vmatpush1.xpose.msra.mxu0 0.0
    %1080 = vmatprep.subr.mxu0 0.0
    %1081 = vmatpush1.xpose.msra.mxu0 0.0
    %1082 = vmatprep.subr.mxu0 0.0
    %1083 = vmatpush1.xpose.msra.mxu0 0.0
    %1084 = vmatprep.subr.mxu0 0.0
    %1085 = vmatpush1.xpose.msra.mxu0 0.0
    %1086 = vmatprep.subr.mxu0 0.0
    %1087 = vmatpush1.xpose.msra.mxu0 0.0
    %1088 = vmatprep.mubr.f32.mxu0 0.0
    %1089 = vmatmul.mubr.f32.gmra.mrb[0].mxu0 %v1016
    %v1090 = vpop.f32.mrb[0].mxu0
    %v1091 = vadd.f32 0.0, %v1090
    %v1092 = vpop.f32.mrb[0].mxu0
    %1093 = vmatprep.mubr.f32.mxu0 0.0
    %1094 = vmatmul.mubr.f32.gmra.mrb[0].mxu0 %v1018
    %v1095 = vpop.f32.mrb[0].mxu0
    %v1096 = vadd.f32 0.0, %v1095
    %v1097 = vpop.f32.mrb[0].mxu0
    %1098 = vdwg.mxu0
    %v1099 = vsel %vm265, %v1091, -inf
    %1100 = vmax.xlane.f32.xlu0 %v1099
    %v1101 = vpop.xlane.xlu0 %1100
    %v1102 = vsel %vm265, %v1096, -inf
    %1103 = vmax.xlane.f32.xlu0 %v1102
    %v1104 = vpop.xlane.xlu0 %1103
    %v1105 = vsub.f32 %v1091, %v1101
    %v1106 = vsub.f32 %v1096, %v1104
    %v1107 = vmul.f32 %v1105, 1.442695
    %v1108 = vpow.pop %v1107
    %v1109 = vmul.f32 %v1106, 1.442695
    %v1110 = vpow.pop %v1109
    %v1111 = vsel %vm265, %v1108, 0.0
    %1112 = vadd.xlane.f32.xlu0 %v1111
    %v1113 = vpop.xlane.xlu0 %1112
    %v1114 = vsel %vm265, %v1110, 0.0
    %1115 = vadd.xlane.f32.xlu0 %v1114
    %v1116 = vpop.xlane.xlu0 %1115
    %v1117 = vrcp.pop %v1113
    %v1118 = vrcp.pop %v1116
    %v1119 = vmul.f32 %v1108, %v1117
    %v1120 = vmul.f32 %v1110, %v1118
    %1121 = vrot.lane.b32.xlu0 %v167, 64
    %v1122 = vpop.permute.xlu0 %1121
    %1123 = vrot.lane.b32.xlu0 %v172, 64
    %v1124 = vpop.permute.xlu0 %1123
    %v1128 = vsel %vm265, %v1119, 0
    %v1131 = vsel %vm265, %v1120, 0
    %1133 = vmatprep.subr.mxu0 0.0
    %1134 = vmatpush1.msra.mxu0 %v1122
    %1135 = vmatprep.subr.mxu0 0.0
    %1136 = vmatpush1.msra.mxu0 %v1124
    %1137 = vmatprep.subr.mxu0 0.0
    %1138 = vmatpush1.msra.mxu0 0.0
    %1139 = vmatprep.subr.mxu0 0.0
    %1140 = vmatpush1.msra.mxu0 0.0
    %1141 = vmatprep.subr.mxu0 0.0
    %1142 = vmatpush1.msra.mxu0 0.0
    %1143 = vmatprep.subr.mxu0 0.0
    %1144 = vmatpush1.msra.mxu0 0.0
    %1145 = vmatprep.subr.mxu0 0.0
    %1146 = vmatpush1.msra.mxu0 0.0
    %1147 = vmatprep.subr.mxu0 0.0
    %1148 = vmatpush1.msra.mxu0 0.0
    %1149 = vmatprep.subr.mxu0 0.0
    %1150 = vmatpush1.msra.mxu0 0.0
    %1151 = vmatprep.subr.mxu0 0.0
    %1152 = vmatpush1.msra.mxu0 0.0
    %1153 = vmatprep.subr.mxu0 0.0
    %1154 = vmatpush1.msra.mxu0 0.0
    %1155 = vmatprep.subr.mxu0 0.0
    %1156 = vmatpush1.msra.mxu0 0.0
    %1157 = vmatprep.subr.mxu0 0.0
    %1158 = vmatpush1.msra.mxu0 0.0
    %1159 = vmatprep.subr.mxu0 0.0
    %1160 = vmatpush1.msra.mxu0 0.0
    %1161 = vmatprep.subr.mxu0 0.0
    %1162 = vmatpush1.msra.mxu0 0.0
    %1163 = vmatprep.subr.mxu0 0.0
    %1164 = vmatpush1.msra.mxu0 0.0
    %1165 = vmatprep.subr.mxu0 0.0
    %1166 = vmatpush1.msra.mxu0 0.0
    %1167 = vmatprep.subr.mxu0 0.0
    %1168 = vmatpush1.msra.mxu0 0.0
    %1169 = vmatprep.subr.mxu0 0.0
    %1170 = vmatpush1.msra.mxu0 0.0
    %1171 = vmatprep.subr.mxu0 0.0
    %1172 = vmatpush1.msra.mxu0 0.0
    %1173 = vmatprep.subr.mxu0 0.0
    %1174 = vmatpush1.msra.mxu0 0.0
    %1175 = vmatprep.subr.mxu0 0.0
    %1176 = vmatpush1.msra.mxu0 0.0
    %1177 = vmatprep.subr.mxu0 0.0
    %1178 = vmatpush1.msra.mxu0 0.0
    %1179 = vmatprep.subr.mxu0 0.0
    %1180 = vmatpush1.msra.mxu0 0.0
    %1181 = vmatprep.subr.mxu0 0.0
    %1182 = vmatpush1.msra.mxu0 0.0
    %1183 = vmatprep.subr.mxu0 0.0
    %1184 = vmatpush1.msra.mxu0 0.0
    %1185 = vmatprep.subr.mxu0 0.0
    %1186 = vmatpush1.msra.mxu0 0.0
    %1187 = vmatprep.subr.mxu0 0.0
    %1188 = vmatpush1.msra.mxu0 0.0
    %1189 = vmatprep.subr.mxu0 0.0
    %1190 = vmatpush1.msra.mxu0 0.0
    %1191 = vmatprep.subr.mxu0 0.0
    %1192 = vmatpush1.msra.mxu0 0.0
    %1193 = vmatprep.subr.mxu0 0.0
    %1194 = vmatpush1.msra.mxu0 0.0
    %1195 = vmatprep.subr.mxu0 0.0
    %1196 = vmatpush1.msra.mxu0 0.0
    %1197 = vmatprep.mubr.f32.mxu0 0.0
    %1198 = vmatmul.mubr.f32.gmra.mrb[0].mxu0 %v1128
    %v1199 = vpop.f32.mrb[0].mxu0
    %v1200 = vadd.f32 0.0, %v1199
    %v1201 = vpop.f32.mrb[0].mxu0
    %1202 = vmatprep.mubr.f32.mxu0 0.0
    %1203 = vmatmul.mubr.f32.gmra.mrb[0].mxu0 %v1131
    %v1204 = vpop.f32.mrb[0].mxu0
    %v1205 = vadd.f32 0.0, %v1204
    %v1206 = vpop.f32.mrb[0].mxu0
    %1207 = vdwg.mxu0
    %1208 = vst.msk [vmem:[#allocation2 + $0x10] sm:$0xff] %vm181, %v1200
    %1209 = vst.msk [vmem:[#allocation2 + $0x18] sm:$0xff] %vm181, %v1205
    %1210 = vrot.lane.b32.xlu0 %v167, 120
    %v1211 = vpop.permute.xlu0 %1210
    %1212 = vrot.lane.b32.xlu0 %v172, 120
    %v1213 = vpop.permute.xlu0 %1212
    %1214 = vrot.lane.b32.xlu0 %v167, 88
    %v1215 = vpop.permute.xlu0 %1214
    %1216 = vrot.lane.b32.xlu0 %v172, 88
    %v1217 = vpop.permute.xlu0 %1216
    %v1218 = vsel %vm181, %v1211, 0
    %v1220 = vsel %vm181, %v1213, 0
    %v1222 = vsel %vm181, %v1215, 0
    %v1224 = vsel %vm181, %v1217, 0
    %1226 = vmatprep.subr.mxu0 0.0
    %1227 = vmatpush1.xpose.msra.mxu0 %v1222
    %1228 = vmatprep.subr.mxu0 0.0
    %1229 = vmatpush1.xpose.msra.mxu0 %v1224
    %1230 = vmatprep.subr.mxu0 0.0
    %1231 = vmatpush1.xpose.msra.mxu0 0.0
    %1232 = vmatprep.subr.mxu0 0.0
    %1233 = vmatpush1.xpose.msra.mxu0 0.0
    %1234 = vmatprep.subr.mxu0 0.0
    %1235 = vmatpush1.xpose.msra.mxu0 0.0
    %1236 = vmatprep.subr.mxu0 0.0
    %1237 = vmatpush1.xpose.msra.mxu0 0.0
    %1238 = vmatprep.subr.mxu0 0.0
    %1239 = vmatpush1.xpose.msra.mxu0 0.0
    %1240 = vmatprep.subr.mxu0 0.0
    %1241 = vmatpush1.xpose.msra.mxu0 0.0
    %1242 = vmatprep.subr.mxu0 0.0
    %1243 = vmatpush1.xpose.msra.mxu0 0.0
    %1244 = vmatprep.subr.mxu0 0.0
    %1245 = vmatpush1.xpose.msra.mxu0 0.0
    %1246 = vmatprep.subr.mxu0 0.0
    %1247 = vmatpush1.xpose.msra.mxu0 0.0
    %1248 = vmatprep.subr.mxu0 0.0
    %1249 = vmatpush1.xpose.msra.mxu0 0.0
    %1250 = vmatprep.subr.mxu0 0.0
    %1251 = vmatpush1.xpose.msra.mxu0 0.0
    %1252 = vmatprep.subr.mxu0 0.0
    %1253 = vmatpush1.xpose.msra.mxu0 0.0
    %1254 = vmatprep.subr.mxu0 0.0
    %1255 = vmatpush1.xpose.msra.mxu0 0.0
    %1256 = vmatprep.subr.mxu0 0.0
    %1257 = vmatpush1.xpose.msra.mxu0 0.0
    %1258 = vmatprep.subr.mxu0 0.0
    %1259 = vmatpush1.xpose.msra.mxu0 0.0
    %1260 = vmatprep.subr.mxu0 0.0
    %1261 = vmatpush1.xpose.msra.mxu0 0.0
    %1262 = vmatprep.subr.mxu0 0.0
    %1263 = vmatpush1.xpose.msra.mxu0 0.0
    %1264 = vmatprep.subr.mxu0 0.0
    %1265 = vmatpush1.xpose.msra.mxu0 0.0
    %1266 = vmatprep.subr.mxu0 0.0
    %1267 = vmatpush1.xpose.msra.mxu0 0.0
    %1268 = vmatprep.subr.mxu0 0.0
    %1269 = vmatpush1.xpose.msra.mxu0 0.0
    %1270 = vmatprep.subr.mxu0 0.0
    %1271 = vmatpush1.xpose.msra.mxu0 0.0
    %1272 = vmatprep.subr.mxu0 0.0
    %1273 = vmatpush1.xpose.msra.mxu0 0.0
    %1274 = vmatprep.subr.mxu0 0.0
    %1275 = vmatpush1.xpose.msra.mxu0 0.0
    %1276 = vmatprep.subr.mxu0 0.0
    %1277 = vmatpush1.xpose.msra.mxu0 0.0
    %1278 = vmatprep.subr.mxu0 0.0
    %1279 = vmatpush1.xpose.msra.mxu0 0.0
    %1280 = vmatprep.subr.mxu0 0.0
    %1281 = vmatpush1.xpose.msra.mxu0 0.0
    %1282 = vmatprep.subr.mxu0 0.0
    %1283 = vmatpush1.xpose.msra.mxu0 0.0
    %1284 = vmatprep.subr.mxu0 0.0
    %1285 = vmatpush1.xpose.msra.mxu0 0.0
    %1286 = vmatprep.subr.mxu0 0.0
    %1287 = vmatpush1.xpose.msra.mxu0 0.0
    %1288 = vmatprep.subr.mxu0 0.0
    %1289 = vmatpush1.xpose.msra.mxu0 0.0
    %1290 = vmatprep.mubr.f32.mxu0 0.0
    %1291 = vmatmul.mubr.f32.gmra.mrb[0].mxu0 %v1218
    %v1292 = vpop.f32.mrb[0].mxu0
    %v1293 = vadd.f32 0.0, %v1292
    %v1294 = vpop.f32.mrb[0].mxu0
    %1295 = vmatprep.mubr.f32.mxu0 0.0
    %1296 = vmatmul.mubr.f32.gmra.mrb[0].mxu0 %v1220
    %v1297 = vpop.f32.mrb[0].mxu0
    %v1298 = vadd.f32 0.0, %v1297
    %v1299 = vpop.f32.mrb[0].mxu0
    %1300 = vdwg.mxu0
    %v1301 = vsel %vm265, %v1293, -inf
    %1302 = vmax.xlane.f32.xlu0 %v1301
    %v1303 = vpop.xlane.xlu0 %1302
    %v1304 = vsel %vm265, %v1298, -inf
    %1305 = vmax.xlane.f32.xlu0 %v1304
    %v1306 = vpop.xlane.xlu0 %1305
    %v1307 = vsub.f32 %v1293, %v1303
    %v1308 = vsub.f32 %v1298, %v1306
    %v1309 = vmul.f32 %v1307, 1.442695
    %v1310 = vpow.pop %v1309
    %v1311 = vmul.f32 %v1308, 1.442695
    %v1312 = vpow.pop %v1311
    %v1313 = vsel %vm265, %v1310, 0.0
    %1314 = vadd.xlane.f32.xlu0 %v1313
    %v1315 = vpop.xlane.xlu0 %1314
    %v1316 = vsel %vm265, %v1312, 0.0
    %1317 = vadd.xlane.f32.xlu0 %v1316
    %v1318 = vpop.xlane.xlu0 %1317
    %v1319 = vrcp.pop %v1315
    %v1320 = vrcp.pop %v1318
    %v1321 = vmul.f32 %v1310, %v1319
    %v1322 = vmul.f32 %v1312, %v1320
    %1323 = vrot.lane.b32.xlu0 %v167, 56
    %v1324 = vpop.permute.xlu0 %1323
    %1325 = vrot.lane.b32.xlu0 %v172, 56
    %v1326 = vpop.permute.xlu0 %1325
    %v1330 = vsel %vm265, %v1321, 0
    %v1333 = vsel %vm265, %v1322, 0
    %1335 = vmatprep.subr.mxu0 0.0
    %1336 = vmatpush1.msra.mxu0 %v1324
    %1337 = vmatprep.subr.mxu0 0.0
    %1338 = vmatpush1.msra.mxu0 %v1326
    %1339 = vmatprep.subr.mxu0 0.0
    %1340 = vmatpush1.msra.mxu0 0.0
    %1341 = vmatprep.subr.mxu0 0.0
    %1342 = vmatpush1.msra.mxu0 0.0
    %1343 = vmatprep.subr.mxu0 0.0
    %1344 = vmatpush1.msra.mxu0 0.0
    %1345 = vmatprep.subr.mxu0 0.0
    %1346 = vmatpush1.msra.mxu0 0.0
    %1347 = vmatprep.subr.mxu0 0.0
    %1348 = vmatpush1.msra.mxu0 0.0
    %1349 = vmatprep.subr.mxu0 0.0
    %1350 = vmatpush1.msra.mxu0 0.0
    %1351 = vmatprep.subr.mxu0 0.0
    %1352 = vmatpush1.msra.mxu0 0.0
    %1353 = vmatprep.subr.mxu0 0.0
    %1354 = vmatpush1.msra.mxu0 0.0
    %1355 = vmatprep.subr.mxu0 0.0
    %1356 = vmatpush1.msra.mxu0 0.0
    %1357 = vmatprep.subr.mxu0 0.0
    %1358 = vmatpush1.msra.mxu0 0.0
    %1359 = vmatprep.subr.mxu0 0.0
    %1360 = vmatpush1.msra.mxu0 0.0
    %1361 = vmatprep.subr.mxu0 0.0
    %1362 = vmatpush1.msra.mxu0 0.0
    %1363 = vmatprep.subr.mxu0 0.0
    %1364 = vmatpush1.msra.mxu0 0.0
    %1365 = vmatprep.subr.mxu0 0.0
    %1366 = vmatpush1.msra.mxu0 0.0
    %1367 = vmatprep.subr.mxu0 0.0
    %1368 = vmatpush1.msra.mxu0 0.0
    %1369 = vmatprep.subr.mxu0 0.0
    %1370 = vmatpush1.msra.mxu0 0.0
    %1371 = vmatprep.subr.mxu0 0.0
    %1372 = vmatpush1.msra.mxu0 0.0
    %1373 = vmatprep.subr.mxu0 0.0
    %1374 = vmatpush1.msra.mxu0 0.0
    %1375 = vmatprep.subr.mxu0 0.0
    %1376 = vmatpush1.msra.mxu0 0.0
    %1377 = vmatprep.subr.mxu0 0.0
    %1378 = vmatpush1.msra.mxu0 0.0
    %1379 = vmatprep.subr.mxu0 0.0
    %1380 = vmatpush1.msra.mxu0 0.0
    %1381 = vmatprep.subr.mxu0 0.0
    %1382 = vmatpush1.msra.mxu0 0.0
    %1383 = vmatprep.subr.mxu0 0.0
    %1384 = vmatpush1.msra.mxu0 0.0
    %1385 = vmatprep.subr.mxu0 0.0
    %1386 = vmatpush1.msra.mxu0 0.0
    %1387 = vmatprep.subr.mxu0 0.0
    %1388 = vmatpush1.msra.mxu0 0.0
    %1389 = vmatprep.subr.mxu0 0.0
    %1390 = vmatpush1.msra.mxu0 0.0
    %1391 = vmatprep.subr.mxu0 0.0
    %1392 = vmatpush1.msra.mxu0 0.0
    %1393 = vmatprep.subr.mxu0 0.0
    %1394 = vmatpush1.msra.mxu0 0.0
    %1395 = vmatprep.subr.mxu0 0.0
    %1396 = vmatpush1.msra.mxu0 0.0
    %1397 = vmatprep.subr.mxu0 0.0
    %1398 = vmatpush1.msra.mxu0 0.0
    %1399 = vmatprep.mubr.f32.mxu0 0.0
    %1400 = vmatmul.mubr.f32.gmra.mrb[0].mxu0 %v1330
    %v1401 = vpop.f32.mrb[0].mxu0
    %v1402 = vadd.f32 0.0, %v1401
    %v1403 = vpop.f32.mrb[0].mxu0
    %1404 = vmatprep.mubr.f32.mxu0 0.0
    %1405 = vmatmul.mubr.f32.gmra.mrb[0].mxu0 %v1333
    %v1406 = vpop.f32.mrb[0].mxu0
    %v1407 = vadd.f32 0.0, %v1406
    %v1408 = vpop.f32.mrb[0].mxu0
    %1409 = vdwg.mxu0
    %1412 = vrot.lane.b32.xlu0 %v1402, 8
    %v1413 = vpop.permute.xlu0 %1412
    %1414 = vrot.lane.b32.xlu0 %v1407, 8
    %v1415 = vpop.permute.xlu0 %1414
    %1418 = vst.msk [vmem:[#allocation2 + $0x10] sm:$0xff] %vm585, %v1413
    %1419 = vst.msk [vmem:[#allocation2 + $0x18] sm:$0xff] %vm585, %v1415
    %1420 = vrot.lane.b32.xlu0 %v167, 112
    %v1421 = vpop.permute.xlu0 %1420
    %1422 = vrot.lane.b32.xlu0 %v172, 112
    %v1423 = vpop.permute.xlu0 %1422
    %1424 = vrot.lane.b32.xlu0 %v167, 80
    %v1425 = vpop.permute.xlu0 %1424
    %1426 = vrot.lane.b32.xlu0 %v172, 80
    %v1427 = vpop.permute.xlu0 %1426
    %v1428 = vsel %vm181, %v1421, 0
    %v1430 = vsel %vm181, %v1423, 0
    %v1432 = vsel %vm181, %v1425, 0
    %v1434 = vsel %vm181, %v1427, 0
    %1436 = vmatprep.subr.mxu0 0.0
    %1437 = vmatpush1.xpose.msra.mxu0 %v1432
    %1438 = vmatprep.subr.mxu0 0.0
    %1439 = vmatpush1.xpose.msra.mxu0 %v1434
    %1440 = vmatprep.subr.mxu0 0.0
    %1441 = vmatpush1.xpose.msra.mxu0 0.0
    %1442 = vmatprep.subr.mxu0 0.0
    %1443 = vmatpush1.xpose.msra.mxu0 0.0
    %1444 = vmatprep.subr.mxu0 0.0
    %1445 = vmatpush1.xpose.msra.mxu0 0.0
    %1446 = vmatprep.subr.mxu0 0.0
    %1447 = vmatpush1.xpose.msra.mxu0 0.0
    %1448 = vmatprep.subr.mxu0 0.0
    %1449 = vmatpush1.xpose.msra.mxu0 0.0
    %1450 = vmatprep.subr.mxu0 0.0
    %1451 = vmatpush1.xpose.msra.mxu0 0.0
    %1452 = vmatprep.subr.mxu0 0.0
    %1453 = vmatpush1.xpose.msra.mxu0 0.0
    %1454 = vmatprep.subr.mxu0 0.0
    %1455 = vmatpush1.xpose.msra.mxu0 0.0
    %1456 = vmatprep.subr.mxu0 0.0
    %1457 = vmatpush1.xpose.msra.mxu0 0.0
    %1458 = vmatprep.subr.mxu0 0.0
    %1459 = vmatpush1.xpose.msra.mxu0 0.0
    %1460 = vmatprep.subr.mxu0 0.0
    %1461 = vmatpush1.xpose.msra.mxu0 0.0
    %1462 = vmatprep.subr.mxu0 0.0
    %1463 = vmatpush1.xpose.msra.mxu0 0.0
    %1464 = vmatprep.subr.mxu0 0.0
    %1465 = vmatpush1.xpose.msra.mxu0 0.0
    %1466 = vmatprep.subr.mxu0 0.0
    %1467 = vmatpush1.xpose.msra.mxu0 0.0
    %1468 = vmatprep.subr.mxu0 0.0
    %1469 = vmatpush1.xpose.msra.mxu0 0.0
    %1470 = vmatprep.subr.mxu0 0.0
    %1471 = vmatpush1.xpose.msra.mxu0 0.0
    %1472 = vmatprep.subr.mxu0 0.0
    %1473 = vmatpush1.xpose.msra.mxu0 0.0
    %1474 = vmatprep.subr.mxu0 0.0
    %1475 = vmatpush1.xpose.msra.mxu0 0.0
    %1476 = vmatprep.subr.mxu0 0.0
    %1477 = vmatpush1.xpose.msra.mxu0 0.0
    %1478 = vmatprep.subr.mxu0 0.0
    %1479 = vmatpush1.xpose.msra.mxu0 0.0
    %1480 = vmatprep.subr.mxu0 0.0
    %1481 = vmatpush1.xpose.msra.mxu0 0.0
    %1482 = vmatprep.subr.mxu0 0.0
    %1483 = vmatpush1.xpose.msra.mxu0 0.0
    %1484 = vmatprep.subr.mxu0 0.0
    %1485 = vmatpush1.xpose.msra.mxu0 0.0
    %1486 = vmatprep.subr.mxu0 0.0
    %1487 = vmatpush1.xpose.msra.mxu0 0.0
    %1488 = vmatprep.subr.mxu0 0.0
    %1489 = vmatpush1.xpose.msra.mxu0 0.0
    %1490 = vmatprep.subr.mxu0 0.0
    %1491 = vmatpush1.xpose.msra.mxu0 0.0
    %1492 = vmatprep.subr.mxu0 0.0
    %1493 = vmatpush1.xpose.msra.mxu0 0.0
    %1494 = vmatprep.subr.mxu0 0.0
    %1495 = vmatpush1.xpose.msra.mxu0 0.0
    %1496 = vmatprep.subr.mxu0 0.0
    %1497 = vmatpush1.xpose.msra.mxu0 0.0
    %1498 = vmatprep.subr.mxu0 0.0
    %1499 = vmatpush1.xpose.msra.mxu0 0.0
    %1500 = vmatprep.mubr.f32.mxu0 0.0
    %1501 = vmatmul.mubr.f32.gmra.mrb[0].mxu0 %v1428
    %v1502 = vpop.f32.mrb[0].mxu0
    %v1503 = vadd.f32 0.0, %v1502
    %v1504 = vpop.f32.mrb[0].mxu0
    %1505 = vmatprep.mubr.f32.mxu0 0.0
    %1506 = vmatmul.mubr.f32.gmra.mrb[0].mxu0 %v1430
    %v1507 = vpop.f32.mrb[0].mxu0
    %v1508 = vadd.f32 0.0, %v1507
    %v1509 = vpop.f32.mrb[0].mxu0
    %1510 = vdwg.mxu0
    %v1511 = vsel %vm265, %v1503, -inf
    %1512 = vmax.xlane.f32.xlu0 %v1511
    %v1513 = vpop.xlane.xlu0 %1512
    %v1514 = vsel %vm265, %v1508, -inf
    %1515 = vmax.xlane.f32.xlu0 %v1514
    %v1516 = vpop.xlane.xlu0 %1515
    %v1517 = vsub.f32 %v1503, %v1513
    %v1518 = vsub.f32 %v1508, %v1516
    %v1519 = vmul.f32 %v1517, 1.442695
    %v1520 = vpow.pop %v1519
    %v1521 = vmul.f32 %v1518, 1.442695
    %v1522 = vpow.pop %v1521
    %v1523 = vsel %vm265, %v1520, 0.0
    %1524 = vadd.xlane.f32.xlu0 %v1523
    %v1525 = vpop.xlane.xlu0 %1524
    %v1526 = vsel %vm265, %v1522, 0.0
    %1527 = vadd.xlane.f32.xlu0 %v1526
    %v1528 = vpop.xlane.xlu0 %1527
    %v1529 = vrcp.pop %v1525
    %v1530 = vrcp.pop %v1528
    %v1531 = vmul.f32 %v1520, %v1529
    %v1532 = vmul.f32 %v1522, %v1530
    %1533 = vrot.lane.b32.xlu0 %v167, 48
    %v1534 = vpop.permute.xlu0 %1533
    %1535 = vrot.lane.b32.xlu0 %v172, 48
    %v1536 = vpop.permute.xlu0 %1535
    %v1540 = vsel %vm265, %v1531, 0
    %v1543 = vsel %vm265, %v1532, 0
    %1545 = vmatprep.subr.mxu0 0.0
    %1546 = vmatpush1.msra.mxu0 %v1534
    %1547 = vmatprep.subr.mxu0 0.0
    %1548 = vmatpush1.msra.mxu0 %v1536
    %1549 = vmatprep.subr.mxu0 0.0
    %1550 = vmatpush1.msra.mxu0 0.0
    %1551 = vmatprep.subr.mxu0 0.0
    %1552 = vmatpush1.msra.mxu0 0.0
    %1553 = vmatprep.subr.mxu0 0.0
    %1554 = vmatpush1.msra.mxu0 0.0
    %1555 = vmatprep.subr.mxu0 0.0
    %1556 = vmatpush1.msra.mxu0 0.0
    %1557 = vmatprep.subr.mxu0 0.0
    %1558 = vmatpush1.msra.mxu0 0.0
    %1559 = vmatprep.subr.mxu0 0.0
    %1560 = vmatpush1.msra.mxu0 0.0
    %1561 = vmatprep.subr.mxu0 0.0
    %1562 = vmatpush1.msra.mxu0 0.0
    %1563 = vmatprep.subr.mxu0 0.0
    %1564 = vmatpush1.msra.mxu0 0.0
    %1565 = vmatprep.subr.mxu0 0.0
    %1566 = vmatpush1.msra.mxu0 0.0
    %1567 = vmatprep.subr.mxu0 0.0
    %1568 = vmatpush1.msra.mxu0 0.0
    %1569 = vmatprep.subr.mxu0 0.0
    %1570 = vmatpush1.msra.mxu0 0.0
    %1571 = vmatprep.subr.mxu0 0.0
    %1572 = vmatpush1.msra.mxu0 0.0
    %1573 = vmatprep.subr.mxu0 0.0
    %1574 = vmatpush1.msra.mxu0 0.0
    %1575 = vmatprep.subr.mxu0 0.0
    %1576 = vmatpush1.msra.mxu0 0.0
    %1577 = vmatprep.subr.mxu0 0.0
    %1578 = vmatpush1.msra.mxu0 0.0
    %1579 = vmatprep.subr.mxu0 0.0
    %1580 = vmatpush1.msra.mxu0 0.0
    %1581 = vmatprep.subr.mxu0 0.0
    %1582 = vmatpush1.msra.mxu0 0.0
    %1583 = vmatprep.subr.mxu0 0.0
    %1584 = vmatpush1.msra.mxu0 0.0
    %1585 = vmatprep.subr.mxu0 0.0
    %1586 = vmatpush1.msra.mxu0 0.0
    %1587 = vmatprep.subr.mxu0 0.0
    %1588 = vmatpush1.msra.mxu0 0.0
    %1589 = vmatprep.subr.mxu0 0.0
    %1590 = vmatpush1.msra.mxu0 0.0
    %1591 = vmatprep.subr.mxu0 0.0
    %1592 = vmatpush1.msra.mxu0 0.0
    %1593 = vmatprep.subr.mxu0 0.0
    %1594 = vmatpush1.msra.mxu0 0.0
    %1595 = vmatprep.subr.mxu0 0.0
    %1596 = vmatpush1.msra.mxu0 0.0
    %1597 = vmatprep.subr.mxu0 0.0
    %1598 = vmatpush1.msra.mxu0 0.0
    %1599 = vmatprep.subr.mxu0 0.0
    %1600 = vmatpush1.msra.mxu0 0.0
    %1601 = vmatprep.subr.mxu0 0.0
    %1602 = vmatpush1.msra.mxu0 0.0
    %1603 = vmatprep.subr.mxu0 0.0
    %1604 = vmatpush1.msra.mxu0 0.0
    %1605 = vmatprep.subr.mxu0 0.0
    %1606 = vmatpush1.msra.mxu0 0.0
    %1607 = vmatprep.subr.mxu0 0.0
    %1608 = vmatpush1.msra.mxu0 0.0
    %1609 = vmatprep.mubr.f32.mxu0 0.0
    %1610 = vmatmul.mubr.f32.gmra.mrb[0].mxu0 %v1540
    %v1611 = vpop.f32.mrb[0].mxu0
    %v1612 = vadd.f32 0.0, %v1611
    %v1613 = vpop.f32.mrb[0].mxu0
    %1614 = vmatprep.mubr.f32.mxu0 0.0
    %1615 = vmatmul.mubr.f32.gmra.mrb[0].mxu0 %v1543
    %v1616 = vpop.f32.mrb[0].mxu0
    %v1617 = vadd.f32 0.0, %v1616
    %v1618 = vpop.f32.mrb[0].mxu0
    %1619 = vdwg.mxu0
    %1622 = vrot.lane.b32.xlu0 %v1612, 16
    %v1623 = vpop.permute.xlu0 %1622
    %1624 = vrot.lane.b32.xlu0 %v1617, 16
    %v1625 = vpop.permute.xlu0 %1624
    %1628 = vst.msk [vmem:[#allocation2 + $0x10] sm:$0xff] %vm796, %v1623
    %1629 = vst.msk [vmem:[#allocation2 + $0x18] sm:$0xff] %vm796, %v1625
    %1630 = vrot.lane.b32.xlu0 %v167, 104
    %v1631 = vpop.permute.xlu0 %1630
    %1632 = vrot.lane.b32.xlu0 %v172, 104
    %v1633 = vpop.permute.xlu0 %1632
    %1634 = vrot.lane.b32.xlu0 %v167, 72
    %v1635 = vpop.permute.xlu0 %1634
    %1636 = vrot.lane.b32.xlu0 %v172, 72
    %v1637 = vpop.permute.xlu0 %1636
    %v1638 = vsel %vm181, %v1631, 0
    %v1640 = vsel %vm181, %v1633, 0
    %v1642 = vsel %vm181, %v1635, 0
    %v1644 = vsel %vm181, %v1637, 0
    %1646 = vmatprep.subr.mxu0 0.0
    %1647 = vmatpush1.xpose.msra.mxu0 %v1642
    %1648 = vmatprep.subr.mxu0 0.0
    %1649 = vmatpush1.xpose.msra.mxu0 %v1644
    %1650 = vmatprep.subr.mxu0 0.0
    %1651 = vmatpush1.xpose.msra.mxu0 0.0
    %1652 = vmatprep.subr.mxu0 0.0
    %1653 = vmatpush1.xpose.msra.mxu0 0.0
    %1654 = vmatprep.subr.mxu0 0.0
    %1655 = vmatpush1.xpose.msra.mxu0 0.0
    %1656 = vmatprep.subr.mxu0 0.0
    %1657 = vmatpush1.xpose.msra.mxu0 0.0
    %1658 = vmatprep.subr.mxu0 0.0
    %1659 = vmatpush1.xpose.msra.mxu0 0.0
    %1660 = vmatprep.subr.mxu0 0.0
    %1661 = vmatpush1.xpose.msra.mxu0 0.0
    %1662 = vmatprep.subr.mxu0 0.0
    %1663 = vmatpush1.xpose.msra.mxu0 0.0
    %1664 = vmatprep.subr.mxu0 0.0
    %1665 = vmatpush1.xpose.msra.mxu0 0.0
    %1666 = vmatprep.subr.mxu0 0.0
    %1667 = vmatpush1.xpose.msra.mxu0 0.0
    %1668 = vmatprep.subr.mxu0 0.0
    %1669 = vmatpush1.xpose.msra.mxu0 0.0
    %1670 = vmatprep.subr.mxu0 0.0
    %1671 = vmatpush1.xpose.msra.mxu0 0.0
    %1672 = vmatprep.subr.mxu0 0.0
    %1673 = vmatpush1.xpose.msra.mxu0 0.0
    %1674 = vmatprep.subr.mxu0 0.0
    %1675 = vmatpush1.xpose.msra.mxu0 0.0
    %1676 = vmatprep.subr.mxu0 0.0
    %1677 = vmatpush1.xpose.msra.mxu0 0.0
    %1678 = vmatprep.subr.mxu0 0.0
    %1679 = vmatpush1.xpose.msra.mxu0 0.0
    %1680 = vmatprep.subr.mxu0 0.0
    %1681 = vmatpush1.xpose.msra.mxu0 0.0
    %1682 = vmatprep.subr.mxu0 0.0
    %1683 = vmatpush1.xpose.msra.mxu0 0.0
    %1684 = vmatprep.subr.mxu0 0.0
    %1685 = vmatpush1.xpose.msra.mxu0 0.0
    %1686 = vmatprep.subr.mxu0 0.0
    %1687 = vmatpush1.xpose.msra.mxu0 0.0
    %1688 = vmatprep.subr.mxu0 0.0
    %1689 = vmatpush1.xpose.msra.mxu0 0.0
    %1690 = vmatprep.subr.mxu0 0.0
    %1691 = vmatpush1.xpose.msra.mxu0 0.0
    %1692 = vmatprep.subr.mxu0 0.0
    %1693 = vmatpush1.xpose.msra.mxu0 0.0
    %1694 = vmatprep.subr.mxu0 0.0
    %1695 = vmatpush1.xpose.msra.mxu0 0.0
    %1696 = vmatprep.subr.mxu0 0.0
    %1697 = vmatpush1.xpose.msra.mxu0 0.0
    %1698 = vmatprep.subr.mxu0 0.0
    %1699 = vmatpush1.xpose.msra.mxu0 0.0
    %1700 = vmatprep.subr.mxu0 0.0
    %1701 = vmatpush1.xpose.msra.mxu0 0.0
    %1702 = vmatprep.subr.mxu0 0.0
    %1703 = vmatpush1.xpose.msra.mxu0 0.0
    %1704 = vmatprep.subr.mxu0 0.0
    %1705 = vmatpush1.xpose.msra.mxu0 0.0
    %1706 = vmatprep.subr.mxu0 0.0
    %1707 = vmatpush1.xpose.msra.mxu0 0.0
    %1708 = vmatprep.subr.mxu0 0.0
    %1709 = vmatpush1.xpose.msra.mxu0 0.0
    %1710 = vmatprep.mubr.f32.mxu0 0.0
    %1711 = vmatmul.mubr.f32.gmra.mrb[0].mxu0 %v1638
    %v1712 = vpop.f32.mrb[0].mxu0
    %v1713 = vadd.f32 0.0, %v1712
    %v1714 = vpop.f32.mrb[0].mxu0
    %1715 = vmatprep.mubr.f32.mxu0 0.0
    %1716 = vmatmul.mubr.f32.gmra.mrb[0].mxu0 %v1640
    %v1717 = vpop.f32.mrb[0].mxu0
    %v1718 = vadd.f32 0.0, %v1717
    %v1719 = vpop.f32.mrb[0].mxu0
    %1720 = vdwg.mxu0
    %v1721 = vsel %vm265, %v1713, -inf
    %1722 = vmax.xlane.f32.xlu0 %v1721
    %v1723 = vpop.xlane.xlu0 %1722
    %v1724 = vsel %vm265, %v1718, -inf
    %1725 = vmax.xlane.f32.xlu0 %v1724
    %v1726 = vpop.xlane.xlu0 %1725
    %v1727 = vsub.f32 %v1713, %v1723
    %v1728 = vsub.f32 %v1718, %v1726
    %v1729 = vmul.f32 %v1727, 1.442695
    %v1730 = vpow.pop %v1729
    %v1731 = vmul.f32 %v1728, 1.442695
    %v1732 = vpow.pop %v1731
    %v1733 = vsel %vm265, %v1730, 0.0
    %1734 = vadd.xlane.f32.xlu0 %v1733
    %v1735 = vpop.xlane.xlu0 %1734
    %v1736 = vsel %vm265, %v1732, 0.0
    %1737 = vadd.xlane.f32.xlu0 %v1736
    %v1738 = vpop.xlane.xlu0 %1737
    %v1739 = vrcp.pop %v1735
    %v1740 = vrcp.pop %v1738
    %v1741 = vmul.f32 %v1730, %v1739
    %v1742 = vmul.f32 %v1732, %v1740
    %1743 = vrot.lane.b32.xlu0 %v167, 40
    %v1744 = vpop.permute.xlu0 %1743
    %1745 = vrot.lane.b32.xlu0 %v172, 40
    %v1746 = vpop.permute.xlu0 %1745
    %v1750 = vsel %vm265, %v1741, 0
    %v1753 = vsel %vm265, %v1742, 0
    %1755 = vmatprep.subr.mxu0 0.0
    %1756 = vmatpush1.msra.mxu0 %v1744
    %1757 = vmatprep.subr.mxu0 0.0
    %1758 = vmatpush1.msra.mxu0 %v1746
    %1759 = vmatprep.subr.mxu0 0.0
    %1760 = vmatpush1.msra.mxu0 0.0
    %1761 = vmatprep.subr.mxu0 0.0
    %1762 = vmatpush1.msra.mxu0 0.0
    %1763 = vmatprep.subr.mxu0 0.0
    %1764 = vmatpush1.msra.mxu0 0.0
    %1765 = vmatprep.subr.mxu0 0.0
    %1766 = vmatpush1.msra.mxu0 0.0
    %1767 = vmatprep.subr.mxu0 0.0
    %1768 = vmatpush1.msra.mxu0 0.0
    %1769 = vmatprep.subr.mxu0 0.0
    %1770 = vmatpush1.msra.mxu0 0.0
    %1771 = vmatprep.subr.mxu0 0.0
    %1772 = vmatpush1.msra.mxu0 0.0
    %1773 = vmatprep.subr.mxu0 0.0
    %1774 = vmatpush1.msra.mxu0 0.0
    %1775 = vmatprep.subr.mxu0 0.0
    %1776 = vmatpush1.msra.mxu0 0.0
    %1777 = vmatprep.subr.mxu0 0.0
    %1778 = vmatpush1.msra.mxu0 0.0
    %1779 = vmatprep.subr.mxu0 0.0
    %1780 = vmatpush1.msra.mxu0 0.0
    %1781 = vmatprep.subr.mxu0 0.0
    %1782 = vmatpush1.msra.mxu0 0.0
    %1783 = vmatprep.subr.mxu0 0.0
    %1784 = vmatpush1.msra.mxu0 0.0
    %1785 = vmatprep.subr.mxu0 0.0
    %1786 = vmatpush1.msra.mxu0 0.0
    %1787 = vmatprep.subr.mxu0 0.0
    %1788 = vmatpush1.msra.mxu0 0.0
    %1789 = vmatprep.subr.mxu0 0.0
    %1790 = vmatpush1.msra.mxu0 0.0
    %1791 = vmatprep.subr.mxu0 0.0
    %1792 = vmatpush1.msra.mxu0 0.0
    %1793 = vmatprep.subr.mxu0 0.0
    %1794 = vmatpush1.msra.mxu0 0.0
    %1795 = vmatprep.subr.mxu0 0.0
    %1796 = vmatpush1.msra.mxu0 0.0
    %1797 = vmatprep.subr.mxu0 0.0
    %1798 = vmatpush1.msra.mxu0 0.0
    %1799 = vmatprep.subr.mxu0 0.0
    %1800 = vmatpush1.msra.mxu0 0.0
    %1801 = vmatprep.subr.mxu0 0.0
    %1802 = vmatpush1.msra.mxu0 0.0
    %1803 = vmatprep.subr.mxu0 0.0
    %1804 = vmatpush1.msra.mxu0 0.0
    %1805 = vmatprep.subr.mxu0 0.0
    %1806 = vmatpush1.msra.mxu0 0.0
    %1807 = vmatprep.subr.mxu0 0.0
    %1808 = vmatpush1.msra.mxu0 0.0
    %1809 = vmatprep.subr.mxu0 0.0
    %1810 = vmatpush1.msra.mxu0 0.0
    %1811 = vmatprep.subr.mxu0 0.0
    %1812 = vmatpush1.msra.mxu0 0.0
    %1813 = vmatprep.subr.mxu0 0.0
    %1814 = vmatpush1.msra.mxu0 0.0
    %1815 = vmatprep.subr.mxu0 0.0
    %1816 = vmatpush1.msra.mxu0 0.0
    %1817 = vmatprep.subr.mxu0 0.0
    %1818 = vmatpush1.msra.mxu0 0.0
    %1819 = vmatprep.mubr.f32.mxu0 0.0
    %1820 = vmatmul.mubr.f32.gmra.mrb[0].mxu0 %v1750
    %v1821 = vpop.f32.mrb[0].mxu0
    %v1822 = vadd.f32 0.0, %v1821
    %v1823 = vpop.f32.mrb[0].mxu0
    %1824 = vmatprep.mubr.f32.mxu0 0.0
    %1825 = vmatmul.mubr.f32.gmra.mrb[0].mxu0 %v1753
    %v1826 = vpop.f32.mrb[0].mxu0
    %v1827 = vadd.f32 0.0, %v1826
    %v1828 = vpop.f32.mrb[0].mxu0
    %1829 = vdwg.mxu0
    %1832 = vrot.lane.b32.xlu0 %v1822, 24
    %v1833 = vpop.permute.xlu0 %1832
    %1834 = vrot.lane.b32.xlu0 %v1827, 24
    %v1835 = vpop.permute.xlu0 %1834
    %1838 = vst.msk [vmem:[#allocation2 + $0x10] sm:$0xff] %vm1007, %v1833
    %1839 = vst.msk [vmem:[#allocation2 + $0x18] sm:$0xff] %vm1007, %v1835
    %v1840 = vld [vmem:[%s4] sm:$0x1]
    %v1841 = vld [vmem:[%s4 + $0x1] sm:$0x1]
    %v1842 = vld [vmem:[%s4 + $0x2] sm:$0x1]
    %v1843 = vld [vmem:[#allocation2] sm:$0xff]
    %v1844 = vld [vmem:[#allocation2 + $0x8] sm:$0xff]
    %v1845 = vld [vmem:[#allocation2 + $0x10] sm:$0xff]
    %v1846 = vld [vmem:[#allocation2 + $0x18] sm:$0xff]
    %v1847 = vld [vmem:[#allocation8] sm:$0xff]
    %v1848 = vld [vmem:[#allocation8 + $0x8] sm:$0xff]
    %v1849 = vld [vmem:[#allocation8 + $0x10] sm:$0xff]
    %v1850 = vld [vmem:[#allocation8 + $0x18] sm:$0xff]
    %v1851 = vlaneseq
    %v1852 = vshrl.u32 %v1851, 7
    %v1853 = vsub.s32 0, %v1852
    %v1854 = vrot.slane %v1840, %v1853
    %v1856 = vsel %vm77, %v1843, 0
    %v1859 = vsel %vm77, %v1844, 0
    %v1862 = vsel %vm77, %v1845, 0
    %v1865 = vsel %vm77, %v1846, 0
    %1867 = vmatprep.subr.mxu0 0.0
    %1868 = vmatpush1.msra.mxu0 %v1847
    %1869 = vmatprep.subr.mxu0 0.0
    %1870 = vmatpush1.msra.mxu0 %v1848
    %1871 = vmatprep.subr.mxu0 0.0
    %1872 = vmatpush1.msra.mxu0 %v1849
    %1873 = vmatprep.subr.mxu0 0.0
    %1874 = vmatpush1.msra.mxu0 %v1850
    %1875 = vmatprep.subr.mxu0 0.0
    %1876 = vmatpush1.msra.mxu0 0.0
    %1877 = vmatprep.subr.mxu0 0.0
    %1878 = vmatpush1.msra.mxu0 0.0
    %1879 = vmatprep.subr.mxu0 0.0
    %1880 = vmatpush1.msra.mxu0 0.0
    %1881 = vmatprep.subr.mxu0 0.0
    %1882 = vmatpush1.msra.mxu0 0.0
    %1883 = vmatprep.subr.mxu0 0.0
    %1884 = vmatpush1.msra.mxu0 0.0
    %1885 = vmatprep.subr.mxu0 0.0
    %1886 = vmatpush1.msra.mxu0 0.0
    %1887 = vmatprep.subr.mxu0 0.0
    %1888 = vmatpush1.msra.mxu0 0.0
    %1889 = vmatprep.subr.mxu0 0.0
    %1890 = vmatpush1.msra.mxu0 0.0
    %1891 = vmatprep.subr.mxu0 0.0
    %1892 = vmatpush1.msra.mxu0 0.0
    %1893 = vmatprep.subr.mxu0 0.0
    %1894 = vmatpush1.msra.mxu0 0.0
    %1895 = vmatprep.subr.mxu0 0.0
    %1896 = vmatpush1.msra.mxu0 0.0
    %1897 = vmatprep.subr.mxu0 0.0
    %1898 = vmatpush1.msra.mxu0 0.0
    %1899 = vmatprep.subr.mxu0 0.0
    %1900 = vmatpush1.msra.mxu0 0.0
    %1901 = vmatprep.subr.mxu0 0.0
    %1902 = vmatpush1.msra.mxu0 0.0
    %1903 = vmatprep.subr.mxu0 0.0
    %1904 = vmatpush1.msra.mxu0 0.0
    %1905 = vmatprep.subr.mxu0 0.0
    %1906 = vmatpush1.msra.mxu0 0.0
    %1907 = vmatprep.subr.mxu0 0.0
    %1908 = vmatpush1.msra.mxu0 0.0
    %1909 = vmatprep.subr.mxu0 0.0
    %1910 = vmatpush1.msra.mxu0 0.0
    %1911 = vmatprep.subr.mxu0 0.0
    %1912 = vmatpush1.msra.mxu0 0.0
    %1913 = vmatprep.subr.mxu0 0.0
    %1914 = vmatpush1.msra.mxu0 0.0
    %1915 = vmatprep.subr.mxu0 0.0
    %1916 = vmatpush1.msra.mxu0 0.0
    %1917 = vmatprep.subr.mxu0 0.0
    %1918 = vmatpush1.msra.mxu0 0.0
    %1919 = vmatprep.subr.mxu0 0.0
    %1920 = vmatpush1.msra.mxu0 0.0
    %1921 = vmatprep.subr.mxu0 0.0
    %1922 = vmatpush1.msra.mxu0 0.0
    %1923 = vmatprep.subr.mxu0 0.0
    %1924 = vmatpush1.msra.mxu0 0.0
    %1925 = vmatprep.subr.mxu0 0.0
    %1926 = vmatpush1.msra.mxu0 0.0
    %1927 = vmatprep.subr.mxu0 0.0
    %1928 = vmatpush1.msra.mxu0 0.0
    %1929 = vmatprep.subr.mxu0 0.0
    %1930 = vmatpush1.msra.mxu0 0.0
    %1931 = vmatprep.mubr.f32.mxu0 0.0
    %1932 = vmatmul.mubr.f32.gmra.mrb[0].mxu0 %v1856
    %v1933 = vpop.f32.mrb[0].mxu0
    %v1934 = vadd.f32 %v1854, %v1933
    %v1935 = vpop.f32.mrb[0].mxu0
    %1936 = vmatprep.mubr.f32.mxu0 0.0
    %1937 = vmatmul.mubr.f32.gmra.mrb[0].mxu0 %v1859
    %v1938 = vpop.f32.mrb[0].mxu0
    %v1939 = vadd.f32 %v1854, %v1938
    %v1940 = vpop.f32.mrb[0].mxu0
    %1941 = vmatprep.mubr.f32.mxu0 0.0
    %1942 = vmatmul.mubr.f32.gmra.mrb[0].mxu0 %v1862
    %v1943 = vpop.f32.mrb[0].mxu0
    %v1944 = vadd.f32 %v1854, %v1943
    %v1945 = vpop.f32.mrb[0].mxu0
    %1946 = vmatprep.mubr.f32.mxu0 0.0
    %1947 = vmatmul.mubr.f32.gmra.mrb[0].mxu0 %v1865
    %v1948 = vpop.f32.mrb[0].mxu0
    %v1949 = vadd.f32 %v1854, %v1948
    %v1950 = vpop.f32.mrb[0].mxu0
    %1951 = vdwg.mxu0
    %v1952 = vadd.f32 %v1934, %v62
    %v1953 = vadd.f32 %v1939, %v63
    %v1954 = vadd.f32 %v1944, %v64
    %v1955 = vadd.f32 %v1949, %v65
    %v1956 = vsel %vm77, %v1952, 0.0
    %1957 = vadd.xlane.f32.xlu0 %v1956
    %v1958 = vpop.xlane.xlu0 %1957
    %v1959 = vsel %vm77, %v1953, 0.0
    %1960 = vadd.xlane.f32.xlu0 %v1959
    %v1961 = vpop.xlane.xlu0 %1960
    %v1962 = vsel %vm77, %v1954, 0.0
    %1963 = vadd.xlane.f32.xlu0 %v1962
    %v1964 = vpop.xlane.xlu0 %1963
    %v1965 = vsel %vm77, %v1955, 0.0
    %1966 = vadd.xlane.f32.xlu0 %v1965
    %v1967 = vpop.xlane.xlu0 %1966
    %v1968 = vrcp.pop 32.0
    %v1969 = vmul.f32 %v1958, %v1968
    %v1970 = vmul.f32 %v1961, %v1968
    %v1971 = vmul.f32 %v1964, %v1968
    %v1972 = vmul.f32 %v1967, %v1968
    %v1973 = vsub.f32 %v1952, %v1969
    %v1974 = vsub.f32 %v1953, %v1970
    %v1975 = vsub.f32 %v1954, %v1971
    %v1976 = vsub.f32 %v1955, %v1972
    %v1977 = vmul.f32 %v1973, %v1973
    %v1978 = vmul.f32 %v1974, %v1974
    %v1979 = vmul.f32 %v1975, %v1975
    %v1980 = vmul.f32 %v1976, %v1976
    %v1981 = vsel %vm77, %v1977, 0.0
    %1982 = vadd.xlane.f32.xlu0 %v1981
    %v1983 = vpop.xlane.xlu0 %1982
    %v1984 = vsel %vm77, %v1978, 0.0
    %1985 = vadd.xlane.f32.xlu0 %v1984
    %v1986 = vpop.xlane.xlu0 %1985
    %v1987 = vsel %vm77, %v1979, 0.0
    %1988 = vadd.xlane.f32.xlu0 %v1987
    %v1989 = vpop.xlane.xlu0 %1988
    %v1990 = vsel %vm77, %v1980, 0.0
    %1991 = vadd.xlane.f32.xlu0 %v1990
    %v1992 = vpop.xlane.xlu0 %1991
    %v1993 = vmul.f32 %v1983, %v1968
    %v1994 = vmul.f32 %v1986, %v1968
    %v1995 = vmul.f32 %v1989, %v1968
    %v1996 = vmul.f32 %v1992, %v1968
    %v1997 = vadd.f32 %v1993, 1e-12
    %v1998 = vadd.f32 %v1994, 1e-12
    %v1999 = vadd.f32 %v1995, 1e-12
    %v2000 = vadd.f32 %v1996, 1e-12
    %v2001 = vrsqrt.pop %v1997
    %v2002 = vrsqrt.pop %v1998
    %v2003 = vrsqrt.pop %v1999
    %v2004 = vrsqrt.pop %v2000
    %v2005 = vmul.f32 %v1973, %v2001
    %v2006 = vmul.f32 %v1974, %v2002
    %v2007 = vmul.f32 %v1975, %v2003
    %v2008 = vmul.f32 %v1976, %v2004
    %v2009 = vlaneseq
    %v2010 = vshrl.u32 %v2009, 7
    %v2011 = vsub.s32 0, %v2010
    %v2012 = vrot.slane %v1841, %v2011
    %v2013 = vmul.f32 %v2005, %v2012
    %v2014 = vmul.f32 %v2006, %v2012
    %v2015 = vmul.f32 %v2007, %v2012
    %v2016 = vmul.f32 %v2008, %v2012
    %v2017 = vlaneseq
    %v2018 = vshrl.u32 %v2017, 7
    %v2019 = vsub.s32 0, %v2018
    %v2020 = vrot.slane %v1842, %v2019
    %v2021 = vadd.f32 %v2013, %v2020
    %v2022 = vadd.f32 %v2014, %v2020
    %v2023 = vadd.f32 %v2015, %v2020
    %v2024 = vadd.f32 %v2016, %v2020
    %2025 = vst.msk [vmem:[#allocation9] sm:$0xff] %vm77, %v2021
    %2026 = vst.msk [vmem:[#allocation9 + $0x8] sm:$0xff] %vm77, %v2022
    %2027 = vst.msk [vmem:[#allocation9 + $0x10] sm:$0xff] %vm77, %v2023
    %2028 = vst.msk [vmem:[#allocation9 + $0x18] sm:$0xff] %vm77, %v2024
    // Predicated region
    $region34: #{tpu_custom_call.1} parent=1 // pred_check
      _
    $region35: #{tpu_custom_call.1} parent=1 // pred_check_branch
      %2030 = sbr.rel (0) target = $region37
    $region36: #{tpu_custom_call.1} parent=1 // pred_region
      %s2032 = ssub.s32 512, 512
      %2033 = vsyncadd [#allocation5], %s2032
      %s2034 = sshll.u32 [#allocation9], 4
      %s2035 = int_to_ptr.vmem [resolvable:$true] %s2034
      %2040 = dma.vmem_to_hbm [thread:$0]  %s2035, 512, %s5, [#allocation5], 128, 128, 8
    $region37: #{tpu_custom_call.1} parent=1 // pred_fallthru
      _
    // Predicated region
    $region38: #{tpu_custom_call.1} parent=1 // pred_check
      _
    $region39: #{tpu_custom_call.1} parent=1 // pred_check_branch
      %2042 = sbr.rel (0) target = $region41
    $region40: #{tpu_custom_call.1} parent=1 // pred_region
      %2043 = dma.done [#allocation5], 512
    $region41: #{tpu_custom_call.1} parent=1 // pred_fallthru
      _
    %2044 = vsyncpa [#allocation4], 1
    %2045 = vsyncpa [#allocation7], 1
    %2046 = vsyncpa [#allocation5], 1

</llo_original>
